<compile_context>
chip_gen: v7x
topology: tpu7x:2x2x1
jax: 0.10.0
libtpu: 0.0.40
codegen_flags: <defaults>
</compile_context>

<pallas_src>
import functools

import jax
import jax.numpy as jnp
from jax.experimental import pallas as pl
from jax.experimental.pallas import tpu as pltpu


def _mha_unmixed_kernel(qf_ref, kvf_ref, wq_ref, wk_ref, wv_ref,
                        bq_ref, bk_ref, bv_ref, mask_ref, o_ref,
                        *, num_heads, n_qk, n_v, scale, compute_dtype):
    # qf_ref  : (1, tq, E)   compute_dtype        kvf_ref: (1, Lk, E) compute_dtype
    # wq_ref  : (E, H*n_qk)  wk_ref: (E, H*n_qk)  wv_ref : (E, H*n_v)   (compute_dtype)
    # bq_ref  : (1, H*n_qk)  bk_ref: (1, H*n_qk)  bv_ref : (1, H*n_v)   (f32)
    # mask_ref: (tq, Lk) int8 (nonzero == attend; shared over batch & heads)
    # o_ref   : (1, tq, H*n_v) lane-dense, heads merged
    H = num_heads
    tq = qf_ref.shape[1]
    Lk = kvf_ref.shape[1]

    qf = qf_ref[0]                                   # (tq, E)
    kvf = kvf_ref[0]                                 # (Lk, E)

    # Fused wide projections for all heads, f32 accumulation on the MXU.
    # 1/sqrt(n_qk) folded into q (tq*H*n_qk muls instead of H*tq*Lk).
    q_all = (jnp.dot(qf, wq_ref[...], preferred_element_type=jnp.float32)
             + bq_ref[...]) * scale                  # (tq, H*n_qk) f32
    k_all = (jnp.dot(kvf, wk_ref[...], preferred_element_type=jnp.float32)
             + bk_ref[...])                          # (Lk, H*n_qk) f32
    v_all = (jnp.dot(kvf, wv_ref[...], preferred_element_type=jnp.float32)
             + bv_ref[...])                          # (Lk, H*n_v)  f32

    # Head-batched form: one reshape each, then batched contractions
    # (no per-head lane slicing, no lane-dim concatenate).
    q3 = q_all.reshape(tq, H, n_qk).astype(compute_dtype)   # (tq, H, n_qk)
    k3 = k_all.reshape(Lk, H, n_qk).astype(compute_dtype)   # (Lk, H, n_qk)
    v3 = v_all.reshape(Lk, H, n_v).astype(compute_dtype)    # (Lk, H, n_v)

    scores = jnp.einsum("qhd,khd->hqk", q3, k3,
                        preferred_element_type=jnp.float32)  # (H, tq, Lk) f32

    # int8 mask -> widen to i32 before the compare (conservative lowering path).
    attend = mask_ref[...].astype(jnp.int32) != 0            # (tq, Lk) bool
    scores = jnp.where(attend[None, :, :], scores, -10000.0)

    # Numerically-stable softmax along the key axis, all in f32.
    scores = scores - jnp.max(scores, axis=-1, keepdims=True)
    e = jnp.exp(scores)
    inv = pl.reciprocal(jnp.sum(e, axis=-1, keepdims=True), approx=False)
    p = (e * inv).astype(compute_dtype)                      # (H, tq, Lk)
    # TODO(synk): attn_dropout / resid_dropout in training mode.

    out = jnp.einsum("hqk,khd->qhd", p, v3,
                     preferred_element_type=jnp.float32)     # (tq, H, n_v) f32

    # Single merged-head store.  (H*n_v may be < 128 lanes; fusing a downstream
    # output projection here would make this store fully lane-dense.)
    o_ref[0] = out.reshape(tq, H * n_v).astype(o_ref.dtype)


def multihead_unmixed_attention(q_features, kv_features, mask,
                                Wq, bq, Wk, bk, Wv, bv, *,
                                num_heads, n_qk, n_v,
                                compute_dtype=jnp.bfloat16,
                                block_q=128):
    """q_features: (B, Lq, E); kv_features: (B, Lk, E); mask: (Lq, Lk), nonzero==attend.

    Wq/Wk: (E, H*n_qk), Wv: (E, H*n_v) -- "x @ W + b" convention.
    Returns (B, Lq, H*n_v) with heads merged (same as the PyTorch module).
    `compute_dtype` is the MXU operand dtype (accumulation + softmax stay f32).
    """
    B, Lq, E = q_features.shape
    Lk = kv_features.shape[1]
    H = num_heads
    hqk, hv = H * n_qk, H * n_v
    out_dtype = q_features.dtype

    # Query-axis tiling.  tq multiple-of-8 when it divides Lq, else full Lq.
    # TODO(synk): pad / ragged handling when Lq is not divisible by block_q.
    tq = block_q if (Lq % block_q == 0) else Lq
    nq = Lq // tq

    scale = 1.0 / float(n_qk) ** 0.5                  # Python float -> literal

    # Glue (one-time prep): cast MXU operands to compute_dtype (halves weight
    # VMEM footprint and per-batch activation DMA in bf16 mode), biases to f32,
    # mask to int8.
    qf = q_features.astype(compute_dtype)
    kvf = kv_features.astype(compute_dtype)
    wq = Wq.astype(compute_dtype)
    wk = Wk.astype(compute_dtype)
    wv = Wv.astype(compute_dtype)
    bq2 = bq.astype(jnp.float32).reshape(1, hqk)
    bk2 = bk.astype(jnp.float32).reshape(1, hqk)
    bv2 = bv.astype(jnp.float32).reshape(1, hv)
    mask_i8 = (mask != 0).astype(jnp.int8)

    kernel = functools.partial(
        _mha_unmixed_kernel, num_heads=H, n_qk=n_qk, n_v=n_v,
        scale=scale, compute_dtype=compute_dtype)

    itemsize = jnp.dtype(compute_dtype).itemsize
    flops = (2 * B * Lq * E * hqk                       # Q projection
             + 2 * B * Lk * E * (hqk + hv)              # K / V projections
             + 2 * B * H * Lq * Lk * (n_qk + n_v))      # QK^T + PV
    bytes_accessed = (B * Lq * E * itemsize + B * Lk * E * itemsize
                      + E * (2 * hqk + hv) * itemsize
                      + (2 * hqk + hv) * 4
                      + Lq * Lk
                      + B * Lq * hv * jnp.dtype(out_dtype).itemsize)
    cost = pl.CostEstimate(flops=flops,
                           transcendentals=B * H * Lq * Lk,
                           bytes_accessed=bytes_accessed)

    return pl.pallas_call(
        kernel,
        out_shape=jax.ShapeDtypeStruct((B, Lq, hv), out_dtype),
        grid_spec=pltpu.PrefetchScalarGridSpec(
            num_scalar_prefetch=0,
            grid=(B, nq),
            in_specs=[
                pl.BlockSpec((1, tq, E), lambda b, i: (b, i, 0)),   # q_features
                pl.BlockSpec((1, Lk, E), lambda b, i: (b, 0, 0)),   # kv_features
                pl.BlockSpec((E, hqk), lambda b, i: (0, 0)),        # Wq (resident)
                pl.BlockSpec((E, hqk), lambda b, i: (0, 0)),        # Wk (resident)
                pl.BlockSpec((E, hv), lambda b, i: (0, 0)),         # Wv (resident)
                pl.BlockSpec((1, hqk), lambda b, i: (0, 0)),        # bq
                pl.BlockSpec((1, hqk), lambda b, i: (0, 0)),        # bk
                pl.BlockSpec((1, hv), lambda b, i: (0, 0)),         # bv
                pl.BlockSpec((tq, Lk), lambda b, i: (i, 0)),        # mask (int8)
            ],
            out_specs=pl.BlockSpec((1, tq, hv), lambda b, i: (b, i, 0)),
        ),
        compiler_params=pltpu.CompilerParams(
            dimension_semantics=("parallel", "parallel"),
            vmem_limit_bytes=64 * 1024 * 1024),
        cost_estimate=cost,
    )(qf, kvf, wq, wk, wv, bq2, bk2, bv2, mask_i8)


def _reference(q_features, kv_features, mask, Wq, bq, Wk, bk, Wv, bv,
               *, num_heads, n_qk, n_v):
    """Pure-JAX f32 reference mirroring the PyTorch module."""
    B, Lq, E = q_features.shape
    H = num_heads
    q = q_features @ Wq + bq
    k = kv_features @ Wk + bk
    v = kv_features @ Wv + bv

    def split(t, d):
        return t.reshape(B, -1, H, d).transpose(0, 2, 1, 3)

    q, k, v = split(q, n_qk), split(k, n_qk), split(v, n_v)
    s = jnp.einsum("bhqd,bhkd->bhqk", q, k) / float(n_qk) ** 0.5
    s = jnp.where(mask[None, None].astype(bool), s, -10000.0)
    w = jax.nn.softmax(s, axis=-1)
    o = jnp.einsum("bhqk,bhkd->bhqd", w, v)
    return o.transpose(0, 2, 1, 3).reshape(B, Lq, H * n_v)


if __name__ == "__main__":
    # Config: n_embd=32, n_head=4, n_qk=8, n_v=8; batch=2, seq=8.
    B, Lq, Lk, E = 2, 8, 8, 32
    H, n_qk, n_v = 4, 8, 8

    key = jax.random.PRNGKey(0)
    ks = jax.random.split(key, 8)
    q_features = jax.random.normal(ks[0], (B, Lq, E), dtype=jnp.float32)
    kv_features = jax.random.normal(ks[1], (B, Lk, E), dtype=jnp.float32)

    # Deterministic synthetic parameters (no checkpoint load).
    Wq = jax.random.normal(ks[2], (E, H * n_qk), dtype=jnp.float32) * 0.05
    Wk = jax.random.normal(ks[3], (E, H * n_qk), dtype=jnp.float32) * 0.05
    Wv = jax.random.normal(ks[4], (E, H * n_v), dtype=jnp.float32) * 0.05
    bq = jax.random.normal(ks[5], (H * n_qk,), dtype=jnp.float32) * 0.01
    bk = jax.random.normal(ks[6], (H * n_qk,), dtype=jnp.float32) * 0.01
    bv = jax.random.normal(ks[7], (H * n_v,), dtype=jnp.float32) * 0.01

    # Causal attention mask (Lq, Lk), nonzero == attend.
    mask = (jnp.arange(Lk)[None, :] <= jnp.arange(Lq)[:, None]).astype(jnp.int32)

    ref = _reference(q_features, kv_features, mask, Wq, bq, Wk, bk, Wv, bv,
                     num_heads=H, n_qk=n_qk, n_v=n_v)

    # f32 compute path (parity-oriented).
    out_f32 = multihead_unmixed_attention(
        q_features, kv_features, mask, Wq, bq, Wk, bk, Wv, bv,
        num_heads=H, n_qk=n_qk, n_v=n_v, compute_dtype=jnp.float32)
    out_f32 = jax.block_until_ready(out_f32)
    assert out_f32.shape == (B, Lq, H * n_v), out_f32.shape
    assert jnp.allclose(out_f32, ref, rtol=1e-4, atol=1e-4), \
        float(jnp.max(jnp.abs(out_f32 - ref)))

    # bf16 MXU path (default, recommended on v5e/v6e/v7x); tolerance accounts
    # for bf16 matmul operands (accumulation and softmax remain f32).
    out_bf16 = multihead_unmixed_attention(
        q_features, kv_features, mask, Wq, bq, Wk, bk, Wv, bv,
        num_heads=H, n_qk=n_qk, n_v=n_v, compute_dtype=jnp.bfloat16)
    out_bf16 = jax.block_until_ready(out_bf16)
    assert out_bf16.shape == (B, Lq, H * n_v), out_bf16.shape
    assert jnp.allclose(out_bf16, ref, rtol=2e-2, atol=2e-2), \
        float(jnp.max(jnp.abs(out_bf16 - ref)))

    print("KERNEL_OK")
</pallas_src>

<mosaic_0001>
module attributes {stable_mosaic.version = 11 : i64} {
  func.func @_mha_unmixed_kernel(%arg0: i32, %arg1: i32, %arg2: memref<1x8x32xf32, #tpu.memory_space<vmem>>, %arg3: memref<1x8x32xf32, #tpu.memory_space<vmem>>, %arg4: memref<32x32xf32, #tpu.memory_space<vmem>>, %arg5: memref<32x32xf32, #tpu.memory_space<vmem>>, %arg6: memref<32x32xf32, #tpu.memory_space<vmem>>, %arg7: memref<1x32xf32, #tpu.memory_space<vmem>>, %arg8: memref<1x32xf32, #tpu.memory_space<vmem>>, %arg9: memref<1x32xf32, #tpu.memory_space<vmem>>, %arg10: memref<8x8xi8, #tpu.memory_space<vmem>>, %arg11: memref<1x8x32xf32, #tpu.memory_space<vmem>>) attributes {dimension_semantics = [#tpu.dimension_semantics<parallel>, #tpu.dimension_semantics<parallel>], iteration_bounds = array<i64: 2, 1>, scalar_prefetch = 0 : i64, scratch_operands = 0 : i64, tpu.core_type = #tpu.core_type<tc>, window_params = [{transform_indices = @transform_0, window_bounds = array<i64: 1, 8, 32>}, {transform_indices = @transform_1, window_bounds = array<i64: 1, 8, 32>}, {pipeline_mode = #tpu.pipeline_mode<synchronous>, transform_indices = @transform_2, window_bounds = array<i64: 32, 32>}, {pipeline_mode = #tpu.pipeline_mode<synchronous>, transform_indices = @transform_3, window_bounds = array<i64: 32, 32>}, {pipeline_mode = #tpu.pipeline_mode<synchronous>, transform_indices = @transform_4, window_bounds = array<i64: 32, 32>}, {pipeline_mode = #tpu.pipeline_mode<synchronous>, transform_indices = @transform_5, window_bounds = array<i64: 1, 32>}, {pipeline_mode = #tpu.pipeline_mode<synchronous>, transform_indices = @transform_6, window_bounds = array<i64: 1, 32>}, {pipeline_mode = #tpu.pipeline_mode<synchronous>, transform_indices = @transform_7, window_bounds = array<i64: 1, 32>}, {transform_indices = @transform_8, window_bounds = array<i64: 8, 8>}, {transform_indices = @transform_9, window_bounds = array<i64: 1, 8, 32>}]} {
    %c0 = arith.constant 0 : index
    %c0_0 = arith.constant 0 : index
    %c0_1 = arith.constant 0 : index
    %0 = vector.load %arg2[%c0, %c0_0, %c0_1] : memref<1x8x32xf32, #tpu.memory_space<vmem>>, vector<1x8x32xf32>
    %1 = vector.shape_cast %0 : vector<1x8x32xf32> to vector<8x32xf32>
    %c0_2 = arith.constant 0 : index
    %c0_3 = arith.constant 0 : index
    %c0_4 = arith.constant 0 : index
    %2 = vector.load %arg3[%c0_2, %c0_3, %c0_4] : memref<1x8x32xf32, #tpu.memory_space<vmem>>, vector<1x8x32xf32>
    %3 = vector.shape_cast %2 : vector<1x8x32xf32> to vector<8x32xf32>
    %c0_5 = arith.constant 0 : index
    %c0_6 = arith.constant 0 : index
    %4 = vector.load %arg4[%c0_5, %c0_6] : memref<32x32xf32, #tpu.memory_space<vmem>>, vector<32x32xf32>
    %cst = arith.constant dense<0.000000e+00> : vector<8x32xf32>
    %5 = tpu.matmul %1, %4, %cst {dimension_numbers = #tpu.dot_dimension_numbers<[1], [0], [0], [1], [0, 0, 1, 1], [], []>} : vector<8x32xf32>, vector<32x32xf32>, vector<8x32xf32> -> vector<8x32xf32>
    %c0_7 = arith.constant 0 : index
    %c0_8 = arith.constant 0 : index
    %6 = vector.load %arg7[%c0_7, %c0_8] : memref<1x32xf32, #tpu.memory_space<vmem>>, vector<1x32xf32>
    %7 = vector.broadcast %6 : vector<1x32xf32> to vector<8x32xf32>
    %8 = arith.addf %5, %7 : vector<8x32xf32>
    %cst_9 = arith.constant 0.353553385 : f32
    %9 = vector.broadcast %cst_9 : f32 to vector<8x32xf32>
    %10 = arith.mulf %8, %9 : vector<8x32xf32>
    %c0_10 = arith.constant 0 : index
    %c0_11 = arith.constant 0 : index
    %11 = vector.load %arg5[%c0_10, %c0_11] : memref<32x32xf32, #tpu.memory_space<vmem>>, vector<32x32xf32>
    %cst_12 = arith.constant dense<0.000000e+00> : vector<8x32xf32>
    %12 = tpu.matmul %3, %11, %cst_12 {dimension_numbers = #tpu.dot_dimension_numbers<[1], [0], [0], [1], [0, 0, 1, 1], [], []>} : vector<8x32xf32>, vector<32x32xf32>, vector<8x32xf32> -> vector<8x32xf32>
    %c0_13 = arith.constant 0 : index
    %c0_14 = arith.constant 0 : index
    %13 = vector.load %arg8[%c0_13, %c0_14] : memref<1x32xf32, #tpu.memory_space<vmem>>, vector<1x32xf32>
    %14 = vector.broadcast %13 : vector<1x32xf32> to vector<8x32xf32>
    %15 = arith.addf %12, %14 : vector<8x32xf32>
    %c0_15 = arith.constant 0 : index
    %c0_16 = arith.constant 0 : index
    %16 = vector.load %arg6[%c0_15, %c0_16] : memref<32x32xf32, #tpu.memory_space<vmem>>, vector<32x32xf32>
    %cst_17 = arith.constant dense<0.000000e+00> : vector<8x32xf32>
    %17 = tpu.matmul %3, %16, %cst_17 {dimension_numbers = #tpu.dot_dimension_numbers<[1], [0], [0], [1], [0, 0, 1, 1], [], []>} : vector<8x32xf32>, vector<32x32xf32>, vector<8x32xf32> -> vector<8x32xf32>
    %c0_18 = arith.constant 0 : index
    %c0_19 = arith.constant 0 : index
    %18 = vector.load %arg9[%c0_18, %c0_19] : memref<1x32xf32, #tpu.memory_space<vmem>>, vector<1x32xf32>
    %19 = vector.broadcast %18 : vector<1x32xf32> to vector<8x32xf32>
    %20 = arith.addf %17, %19 : vector<8x32xf32>
    %21 = vector.shape_cast %10 : vector<8x32xf32> to vector<8x4x8xf32>
    %22 = vector.shape_cast %15 : vector<8x32xf32> to vector<8x4x8xf32>
    %23 = vector.shape_cast %20 : vector<8x32xf32> to vector<8x4x8xf32>
    "tpu.trace_start"() <{level = 10 : i32, message = "qhd,khd->hqk"}> : () -> ()
    %cst_20 = arith.constant dense<0.000000e+00> : vector<4x8x8xf32>
    %24 = tpu.matmul %21, %22, %cst_20 {dimension_numbers = #tpu.dot_dimension_numbers<[2], [2], [0], [0], [0, 1, 0, 0, 1, 0], [1], [1]>} : vector<8x4x8xf32>, vector<8x4x8xf32>, vector<4x8x8xf32> -> vector<4x8x8xf32>
    "tpu.trace_stop"() : () -> ()
    %c0_21 = arith.constant 0 : index
    %c0_22 = arith.constant 0 : index
    %25 = vector.load %arg10[%c0_21, %c0_22] : memref<8x8xi8, #tpu.memory_space<vmem>>, vector<8x8xi8>
    %26 = arith.extsi %25 : vector<8x8xi8> to vector<8x8xi32>
    %c0_i32 = arith.constant 0 : i32
    %27 = vector.broadcast %c0_i32 : i32 to vector<8x8xi32>
    %28 = arith.cmpi ne, %26, %27 : vector<8x8xi32>
    %29 = vector.shape_cast %28 : vector<8x8xi1> to vector<1x8x8xi1>
    %cst_23 = arith.constant -1.000000e+04 : f32
    %30 = vector.shape_cast %29 : vector<1x8x8xi1> to vector<1x8x8xi1>
    %31 = vector.broadcast %30 : vector<1x8x8xi1> to vector<4x8x8xi1>
    %32 = vector.broadcast %cst_23 : f32 to vector<4x8x8xf32>
    %33 = arith.select %31, %24, %32 : vector<4x8x8xi1>, vector<4x8x8xf32>
    %cst_24 = arith.constant dense<0xFF800000> : vector<4x8xf32>
    %34 = vector.multi_reduction <maximumf>, %33, %cst_24 [2] : vector<4x8x8xf32> to vector<4x8xf32>
    %35 = vector.shape_cast %34 : vector<4x8xf32> to vector<4x8x1xf32>
    %36 = vector.broadcast %35 : vector<4x8x1xf32> to vector<4x8x8xf32>
    %37 = arith.subf %33, %36 : vector<4x8x8xf32>
    %38 = math.exp %37 : vector<4x8x8xf32>
    %cst_25 = arith.constant dense<0.000000e+00> : vector<4x8xf32>
    %39 = vector.multi_reduction <add>, %38, %cst_25 [2] : vector<4x8x8xf32> to vector<4x8xf32>
    %40 = vector.shape_cast %39 : vector<4x8xf32> to vector<4x8x1xf32>
    %41 = tpu.reciprocal %40 : vector<4x8x1xf32> -> vector<4x8x1xf32>
    %42 = vector.broadcast %41 : vector<4x8x1xf32> to vector<4x8x8xf32>
    %43 = arith.mulf %38, %42 : vector<4x8x8xf32>
    "tpu.trace_start"() <{level = 10 : i32, message = "hqk,khd->qhd"}> : () -> ()
    %cst_26 = arith.constant dense<0.000000e+00> : vector<4x8x8xf32>
    %44 = tpu.matmul %23, %43, %cst_26 {dimension_numbers = #tpu.dot_dimension_numbers<[0], [2], [2], [1], [0, 1, 0, 2, 1, 1], [1], [0]>} : vector<8x4x8xf32>, vector<4x8x8xf32>, vector<4x8x8xf32> -> vector<4x8x8xf32>
    %45 = tpu.transpose %44, [2, 0, 1] : vector<4x8x8xf32> -> vector<8x4x8xf32>
    "tpu.trace_stop"() : () -> ()
    %46 = vector.shape_cast %45 : vector<8x4x8xf32> to vector<8x32xf32>
    %c0_27 = arith.constant 0 : index
    %c0_28 = arith.constant 0 : index
    %c0_29 = arith.constant 0 : index
    %47 = vector.load %arg11[%c0_27, %c0_28, %c0_29] : memref<1x8x32xf32, #tpu.memory_space<vmem>>, vector<1x8x32xf32>
    %48 = vector.shape_cast %47 : vector<1x8x32xf32> to vector<8x32xf32>
    %49 = vector.shape_cast %46 : vector<8x32xf32> to vector<1x8x32xf32>
    tpu.vector_store %arg11[%c0_27, %c0_28, %c0_29], %49 {strides = array<i32>} : memref<1x8x32xf32, #tpu.memory_space<vmem>>, vector<1x8x32xf32>,
    return
  }
  func.func @transform_0(%arg0: i32, %arg1: i32) -> (i32, i32, i32) {
    %c0_i32 = arith.constant 0 : i32
    %c0_i32_0 = arith.constant 0 : i32
    return %arg0, %arg1, %c0_i32 : i32, i32, i32
  }
  func.func @transform_1(%arg0: i32, %arg1: i32) -> (i32, i32, i32) {
    %c0_i32 = arith.constant 0 : i32
    %c0_i32_0 = arith.constant 0 : i32
    %c0_i32_1 = arith.constant 0 : i32
    return %arg0, %c0_i32, %c0_i32_0 : i32, i32, i32
  }
  func.func @transform_2(%arg0: i32, %arg1: i32) -> (i32, i32) {
    %c0_i32 = arith.constant 0 : i32
    %c0_i32_0 = arith.constant 0 : i32
    %c0_i32_1 = arith.constant 0 : i32
    return %c0_i32, %c0_i32_0 : i32, i32
  }
  func.func @transform_3(%arg0: i32, %arg1: i32) -> (i32, i32) {
    %c0_i32 = arith.constant 0 : i32
    %c0_i32_0 = arith.constant 0 : i32
    %c0_i32_1 = arith.constant 0 : i32
    return %c0_i32, %c0_i32_0 : i32, i32
  }
  func.func @transform_4(%arg0: i32, %arg1: i32) -> (i32, i32) {
    %c0_i32 = arith.constant 0 : i32
    %c0_i32_0 = arith.constant 0 : i32
    %c0_i32_1 = arith.constant 0 : i32
    return %c0_i32, %c0_i32_0 : i32, i32
  }
  func.func @transform_5(%arg0: i32, %arg1: i32) -> (i32, i32) {
    %c0_i32 = arith.constant 0 : i32
    %c0_i32_0 = arith.constant 0 : i32
    %c0_i32_1 = arith.constant 0 : i32
    return %c0_i32, %c0_i32_0 : i32, i32
  }
  func.func @transform_6(%arg0: i32, %arg1: i32) -> (i32, i32) {
    %c0_i32 = arith.constant 0 : i32
    %c0_i32_0 = arith.constant 0 : i32
    %c0_i32_1 = arith.constant 0 : i32
    return %c0_i32, %c0_i32_0 : i32, i32
  }
  func.func @transform_7(%arg0: i32, %arg1: i32) -> (i32, i32) {
    %c0_i32 = arith.constant 0 : i32
    %c0_i32_0 = arith.constant 0 : i32
    %c0_i32_1 = arith.constant 0 : i32
    return %c0_i32, %c0_i32_0 : i32, i32
  }
  func.func @transform_8(%arg0: i32, %arg1: i32) -> (i32, i32) {
    %c0_i32 = arith.constant 0 : i32
    %c0_i32_0 = arith.constant 0 : i32
    return %arg1, %c0_i32 : i32, i32
  }
  func.func @transform_9(%arg0: i32, %arg1: i32) -> (i32, i32, i32) {
    %c0_i32 = arith.constant 0 : i32
    %c0_i32_0 = arith.constant 0 : i32
    return %arg0, %arg1, %c0_i32 : i32, i32, i32
  }
}

</mosaic_0001>

<llo_original>
// kernel: tpu_custom_call.1
$region0: #{tpu_custom_call.1}
  #allocation0 [shape = 'u32[]', space=smem, size = 0x4, offset = 0x4, fixed_abs, tag = 'smem constant byte address 0x4 - core index']
  #allocation1 [shape = 'u32[144,128]{1,0:T(1,128)}', space=vmem, size = 0x12000, scoped, tag = 'internal scratch']
  %s0 = inlined_call_operand.hbm [shape: f32[2,8,32], index: 0, kind: input, shape index: {}]
  %s1 = inlined_call_operand.hbm [shape: f32[2,8,32], index: 1, kind: input, shape index: {}]
  %s2 = inlined_call_operand.hbm [shape: f32[32,32], index: 2, kind: input, shape index: {}]
  %s3 = inlined_call_operand.hbm [shape: f32[32,32], index: 3, kind: input, shape index: {}]
  %s4 = inlined_call_operand.hbm [shape: f32[32,32], index: 4, kind: input, shape index: {}]
  %s5 = inlined_call_operand.hbm [shape: f32[1,32], index: 5, kind: input, shape index: {}]
  %s6 = inlined_call_operand.hbm [shape: f32[1,32], index: 6, kind: input, shape index: {}]
  %s7 = inlined_call_operand.hbm [shape: f32[1,32], index: 7, kind: input, shape index: {}]
  %s8 = inlined_call_operand.hbm [shape: s8[8,8], index: 8, kind: input, shape index: {}]
  %s9 = inlined_call_operand.hbm [shape: f32[2,8,32], index: 9, kind: output, shape index: {}]
  %s10 = sld [smem:[#allocation0]]
  $region105: #{tpu_custom_call.1} parent=0
    _
  %s12 = ssub.s32 1, %s10
  %s13 = scalar_select 0, %s12, %s10
  $region1: #{tpu_custom_call.1} parent=0
    #allocation2 [shape = 'u8[8192]{0}', space=vmem, size = 0x2000, scoped, tag = 'input window, operand 0']
    #allocation3 [shape = 's32[2]{0}', space=sflag, size = 0x8, scoped, tag = 'scoped memory for tpu_custom_call.1']
    #allocation4 [shape = 's32[2]{0}', space=sflag, size = 0x8, scoped, tag = 'scoped memory for tpu_custom_call.1']
    #allocation5 [shape = 'u8[8192]{0}', space=vmem, size = 0x2000, scoped, tag = 'input window, operand 1']
    #allocation6 [shape = 's32[2]{0}', space=sflag, size = 0x8, scoped, tag = 'scoped memory for tpu_custom_call.1']
    #allocation7 [shape = 'u8[16384]{0}', space=vmem, size = 0x4000, scoped, tag = 'input window, operand 2, single buffered']
    #allocation8 [shape = 'u8[16384]{0}', space=vmem, size = 0x4000, scoped, tag = 'input window, operand 3, single buffered']
    #allocation9 [shape = 's32[1]{0}', space=sflag, size = 0x4, scoped, tag = 'scoped memory for tpu_custom_call.1']
    #allocation10 [shape = 'u8[16384]{0}', space=vmem, size = 0x4000, scoped, tag = 'input window, operand 4, single buffered']
    #allocation11 [shape = 'u8[512]{0}', space=vmem, size = 0x400, scoped, tag = 'input window, operand 5, single buffered']
    #allocation12 [shape = 's32[1]{0}', space=sflag, size = 0x4, scoped, tag = 'scoped memory for tpu_custom_call.1']
    #allocation13 [shape = 'u8[512]{0}', space=vmem, size = 0x400, scoped, tag = 'input window, operand 6, single buffered']
    #allocation14 [shape = 'u8[512]{0}', space=vmem, size = 0x400, scoped, tag = 'input window, operand 7, single buffered']
    #allocation15 [shape = 's32[1]{0}', space=sflag, size = 0x4, scoped, tag = 'scoped memory for tpu_custom_call.1']
    #allocation16 [shape = 'u8[1024]{0}', space=vmem, size = 0x400, scoped, tag = 'input window, operand 8, single buffered']
    #allocation17 [shape = 'u8[8192]{0}', space=vmem, size = 0x2000, scoped, tag = 'output window, operand 0']
    %14 = vsyncpa [#allocation3], 0
    %s15 = scalar_lea.sflag [#allocation3], 1
    %16 = vsyncpa %s15, 0
    %17 = vsyncpa [#allocation6], 0
    %s18 = scalar_lea.sflag [#allocation6], 1
    %19 = vsyncpa %s18, 0
    %20 = vsyncpa [#allocation9], 0
    %21 = vsyncpa [#allocation12], 0
    %22 = vsyncpa [#allocation15], 0
    %23 = vsyncpa [#allocation4], 0
    %s24 = scalar_lea.sflag [#allocation4], 1
    %25 = vsyncpa %s24, 0
    loop: start=0, step=1, limit=4
    $region2: #{tpu_custom_call.1} parent=1 // loop_pre_header
      _
    $region3: #{tpu_custom_call.1} parent=1 // loop_header
      %s27 = sphi 0, %s31
      %p28 = scmp.ge.s32.totalorder %s27, 4
      %s34 = sphi 0, %s46
      %s35 = sphi 0, %s42
      %s36 = sphi 0, %s34
      %s37 = sphi 0, %s35
      %s38 = sphi 0, %s36
      %s39 = sphi 0, %s37
      %s51 = sphi 0, %s53
      %s54 = sphi 0, %s51
      %s55 = sphi 0, %s54
      %s71 = sphi 0, %s55
      %s77 = sphi 0, %s79
      %s80 = sphi 0, %s77
      %s81 = sphi 0, %s80
      %s97 = sphi 0, %s81
      %s101 = sphi 0, %s101
      %s103 = sphi 0, %s101
      %s104 = sphi 0, %s103
      %s118 = sphi 0, %s104
      %s122 = sphi 0, %s122
      %s124 = sphi 0, %s122
      %s125 = sphi 0, %s124
      %s139 = sphi 0, %s125
      %s143 = sphi 0, %s143
      %s145 = sphi 0, %s143
      %s146 = sphi 0, %s145
      %s160 = sphi 0, %s146
      %s164 = sphi 0, %s164
      %s166 = sphi 0, %s164
      %s167 = sphi 0, %s166
      %s181 = sphi 0, %s167
      %s185 = sphi 0, %s185
      %s187 = sphi 0, %s185
      %s188 = sphi 0, %s187
      %s202 = sphi 0, %s188
      %s206 = sphi 0, %s206
      %s208 = sphi 0, %s206
      %s209 = sphi 0, %s208
      %s223 = sphi 0, %s209
      %s229 = sphi 0, %s231
      %s232 = sphi 0, %s229
      %s233 = sphi 0, %s232
      %s249 = sphi 0, %s233
      %s257 = sphi 0, %s259
      %s260 = sphi 0, %s257
      %s261 = sphi 0, %s260
      %s277 = sphi 0, %s261
    $region4: #{tpu_custom_call.1} parent=1 // loop_header_branch
      %30 = sbr.rel (%p28) target = $region8
    $region5: #{tpu_custom_call.1} parent=1 // loop_body
      %s32 = ssub.s32 %s27, 1
      %s33 = ssub.s32 %s27, 2
      %s40 = sadd.s32 1, %s35
      %p41 = scmp.ge.s32.totalorder %s40, 1
      %s42 = scalar_select %p41, 0, %s40
      %s43 = sadd.s32 1, %s34
      %s44 = scalar_select %p41, %s43, %s34
      %p45 = scmp.ge.s32.totalorder %s44, 2
      %s46 = scalar_select %p45, 0, %s44
      %s47 = ssub.s32 %s34, %s46
      %s48 = ssub.s32 %s35, %s42
      %s49 = sor.u32 %s47, %s48
      %p50 = scmp.eq.s32.totalorder %s49, 0
      %s52 = sadd.s32 %s51, 1
      %s53 = scalar_select %p50, %s51, %s52
      %p56 = pneg %p50
      %p57 = scmp.eq.s32.totalorder %s27, 1
      %p58 = por %p56, %p57
      %p59 = scmp.ne.s32.totalorder %s51, %s54
      %p60 = scmp.eq.s32.totalorder %s27, 0
      %p61 = por %p59, %p60
      %p62 = scmp.ne.s32.totalorder %s51, %s54
      %p63 = scmp.eq.s32.totalorder %s32, 1
      %p64 = por %p62, %p63
      %p65 = scmp.ne.s32.totalorder %s54, %s55
      %p66 = scmp.eq.s32.totalorder %s32, 0
      %p67 = por %p65, %p66
      %p68 = scmp.ne.s32.totalorder %s54, %s55
      %p69 = scmp.eq.s32.totalorder %s33, 1
      %p70 = por %p68, %p69
      %p72 = scmp.ne.s32.totalorder %s55, %s71
      %p73 = scmp.eq.s32.totalorder %s33, 0
      %p74 = por %p72, %p73
      %s75 = ssub.s32 %s34, %s46
      %p76 = scmp.eq.s32.totalorder %s75, 0
      %s78 = sadd.s32 %s77, 1
      %s79 = scalar_select %p76, %s77, %s78
      %p82 = pneg %p76
      %p83 = scmp.eq.s32.totalorder %s27, 1
      %p84 = por %p82, %p83
      %p85 = scmp.ne.s32.totalorder %s77, %s80
      %p86 = scmp.eq.s32.totalorder %s27, 0
      %p87 = por %p85, %p86
      %p88 = scmp.ne.s32.totalorder %s77, %s80
      %p89 = scmp.eq.s32.totalorder %s32, 1
      %p90 = por %p88, %p89
      %p91 = scmp.ne.s32.totalorder %s80, %s81
      %p92 = scmp.eq.s32.totalorder %s32, 0
      %p93 = por %p91, %p92
      %p94 = scmp.ne.s32.totalorder %s80, %s81
      %p95 = scmp.eq.s32.totalorder %s33, 1
      %p96 = por %p94, %p95
      %p98 = scmp.ne.s32.totalorder %s81, %s97
      %p99 = scmp.eq.s32.totalorder %s33, 0
      %p100 = por %p98, %p99
      %s102 = sadd.s32 %s101, 1
      %p105 = scmp.eq.s32.totalorder %s27, 1
      %p106 = scmp.ne.s32.totalorder %s101, %s103
      %p107 = scmp.eq.s32.totalorder %s27, 0
      %p108 = por %p106, %p107
      %p109 = scmp.ne.s32.totalorder %s101, %s103
      %p110 = scmp.eq.s32.totalorder %s32, 1
      %p111 = por %p109, %p110
      %p112 = scmp.ne.s32.totalorder %s103, %s104
      %p113 = scmp.eq.s32.totalorder %s32, 0
      %p114 = por %p112, %p113
      %p115 = scmp.ne.s32.totalorder %s103, %s104
      %p116 = scmp.eq.s32.totalorder %s33, 1
      %p117 = por %p115, %p116
      %p119 = scmp.ne.s32.totalorder %s104, %s118
      %p120 = scmp.eq.s32.totalorder %s33, 0
      %p121 = por %p119, %p120
      %s123 = sadd.s32 %s122, 1
      %p126 = scmp.eq.s32.totalorder %s27, 1
      %p127 = scmp.ne.s32.totalorder %s122, %s124
      %p128 = scmp.eq.s32.totalorder %s27, 0
      %p129 = por %p127, %p128
      %p130 = scmp.ne.s32.totalorder %s122, %s124
      %p131 = scmp.eq.s32.totalorder %s32, 1
      %p132 = por %p130, %p131
      %p133 = scmp.ne.s32.totalorder %s124, %s125
      %p134 = scmp.eq.s32.totalorder %s32, 0
      %p135 = por %p133, %p134
      %p136 = scmp.ne.s32.totalorder %s124, %s125
      %p137 = scmp.eq.s32.totalorder %s33, 1
      %p138 = por %p136, %p137
      %p140 = scmp.ne.s32.totalorder %s125, %s139
      %p141 = scmp.eq.s32.totalorder %s33, 0
      %p142 = por %p140, %p141
      %s144 = sadd.s32 %s143, 1
      %p147 = scmp.eq.s32.totalorder %s27, 1
      %p148 = scmp.ne.s32.totalorder %s143, %s145
      %p149 = scmp.eq.s32.totalorder %s27, 0
      %p150 = por %p148, %p149
      %p151 = scmp.ne.s32.totalorder %s143, %s145
      %p152 = scmp.eq.s32.totalorder %s32, 1
      %p153 = por %p151, %p152
      %p154 = scmp.ne.s32.totalorder %s145, %s146
      %p155 = scmp.eq.s32.totalorder %s32, 0
      %p156 = por %p154, %p155
      %p157 = scmp.ne.s32.totalorder %s145, %s146
      %p158 = scmp.eq.s32.totalorder %s33, 1
      %p159 = por %p157, %p158
      %p161 = scmp.ne.s32.totalorder %s146, %s160
      %p162 = scmp.eq.s32.totalorder %s33, 0
      %p163 = por %p161, %p162
      %s165 = sadd.s32 %s164, 1
      %p168 = scmp.eq.s32.totalorder %s27, 1
      %p169 = scmp.ne.s32.totalorder %s164, %s166
      %p170 = scmp.eq.s32.totalorder %s27, 0
      %p171 = por %p169, %p170
      %p172 = scmp.ne.s32.totalorder %s164, %s166
      %p173 = scmp.eq.s32.totalorder %s32, 1
      %p174 = por %p172, %p173
      %p175 = scmp.ne.s32.totalorder %s166, %s167
      %p176 = scmp.eq.s32.totalorder %s32, 0
      %p177 = por %p175, %p176
      %p178 = scmp.ne.s32.totalorder %s166, %s167
      %p179 = scmp.eq.s32.totalorder %s33, 1
      %p180 = por %p178, %p179
      %p182 = scmp.ne.s32.totalorder %s167, %s181
      %p183 = scmp.eq.s32.totalorder %s33, 0
      %p184 = por %p182, %p183
      %s186 = sadd.s32 %s185, 1
      %p189 = scmp.eq.s32.totalorder %s27, 1
      %p190 = scmp.ne.s32.totalorder %s185, %s187
      %p191 = scmp.eq.s32.totalorder %s27, 0
      %p192 = por %p190, %p191
      %p193 = scmp.ne.s32.totalorder %s185, %s187
      %p194 = scmp.eq.s32.totalorder %s32, 1
      %p195 = por %p193, %p194
      %p196 = scmp.ne.s32.totalorder %s187, %s188
      %p197 = scmp.eq.s32.totalorder %s32, 0
      %p198 = por %p196, %p197
      %p199 = scmp.ne.s32.totalorder %s187, %s188
      %p200 = scmp.eq.s32.totalorder %s33, 1
      %p201 = por %p199, %p200
      %p203 = scmp.ne.s32.totalorder %s188, %s202
      %p204 = scmp.eq.s32.totalorder %s33, 0
      %p205 = por %p203, %p204
      %s207 = sadd.s32 %s206, 1
      %p210 = scmp.eq.s32.totalorder %s27, 1
      %p211 = scmp.ne.s32.totalorder %s206, %s208
      %p212 = scmp.eq.s32.totalorder %s27, 0
      %p213 = por %p211, %p212
      %p214 = scmp.ne.s32.totalorder %s206, %s208
      %p215 = scmp.eq.s32.totalorder %s32, 1
      %p216 = por %p214, %p215
      %p217 = scmp.ne.s32.totalorder %s208, %s209
      %p218 = scmp.eq.s32.totalorder %s32, 0
      %p219 = por %p217, %p218
      %p220 = scmp.ne.s32.totalorder %s208, %s209
      %p221 = scmp.eq.s32.totalorder %s33, 1
      %p222 = por %p220, %p221
      %p224 = scmp.ne.s32.totalorder %s209, %s223
      %p225 = scmp.eq.s32.totalorder %s33, 0
      %p226 = por %p224, %p225
      %s227 = ssub.s32 %s35, %s42
      %p228 = scmp.eq.s32.totalorder %s227, 0
      %s230 = sadd.s32 %s229, 1
      %s231 = scalar_select %p228, %s229, %s230
      %p234 = pneg %p228
      %p235 = scmp.eq.s32.totalorder %s27, 1
      %p236 = por %p234, %p235
      %p237 = scmp.ne.s32.totalorder %s229, %s232
      %p238 = scmp.eq.s32.totalorder %s27, 0
      %p239 = por %p237, %p238
      %p240 = scmp.ne.s32.totalorder %s229, %s232
      %p241 = scmp.eq.s32.totalorder %s32, 1
      %p242 = por %p240, %p241
      %p243 = scmp.ne.s32.totalorder %s232, %s233
      %p244 = scmp.eq.s32.totalorder %s32, 0
      %p245 = por %p243, %p244
      %p246 = scmp.ne.s32.totalorder %s232, %s233
      %p247 = scmp.eq.s32.totalorder %s33, 1
      %p248 = por %p246, %p247
      %p250 = scmp.ne.s32.totalorder %s233, %s249
      %p251 = scmp.eq.s32.totalorder %s33, 0
      %p252 = por %p250, %p251
      %s253 = ssub.s32 %s34, %s46
      %s254 = ssub.s32 %s35, %s42
      %s255 = sor.u32 %s253, %s254
      %p256 = scmp.eq.s32.totalorder %s255, 0
      %s258 = sadd.s32 %s257, 1
      %s259 = scalar_select %p256, %s257, %s258
      %p262 = pneg %p256
      %p263 = scmp.eq.s32.totalorder %s27, 1
      %p264 = por %p262, %p263
      %p265 = scmp.ne.s32.totalorder %s257, %s260
      %p266 = scmp.eq.s32.totalorder %s27, 0
      %p267 = por %p265, %p266
      %p268 = scmp.ne.s32.totalorder %s257, %s260
      %p269 = scmp.eq.s32.totalorder %s32, 1
      %p270 = por %p268, %p269
      %p271 = scmp.ne.s32.totalorder %s260, %s261
      %p272 = scmp.eq.s32.totalorder %s32, 0
      %p273 = por %p271, %p272
      %p274 = scmp.ne.s32.totalorder %s260, %s261
      %p275 = scmp.eq.s32.totalorder %s33, 1
      %p276 = por %p274, %p275
      %p278 = scmp.ne.s32.totalorder %s261, %s277
      %p279 = scmp.eq.s32.totalorder %s33, 0
      %p280 = por %p278, %p279
      %p281 = scmp.le.s32.totalorder 1, %s27
      %p282 = scmp.lt.s32.totalorder %s27, 3
      %p283 = pnand %p281, %p282
      %p284 = pneg %p283
      // Predicated region
      $region9: #{tpu_custom_call.1} parent=5 // pred_check
        _
      $region10: #{tpu_custom_call.1} parent=5 // pred_check_branch
        %286 = sbr.rel (%p283) target = $region12
      $region11: #{tpu_custom_call.1} parent=5 // pred_region
        %s287 = ssub.s32 %s27, 1
        // Predicated region
        $region13: #{tpu_custom_call.1} parent=11 // pred_check
          %p288 = pneg %p114
        $region14: #{tpu_custom_call.1} parent=11 // pred_check_branch
          %290 = sbr.rel (%p288) target = $region16
        $region15: #{tpu_custom_call.1} parent=11 // pred_region
          %s292 = ssub.s32 512, 512
          %293 = vsyncadd [#allocation6], %s292
          %s294 = sshll.u32 [#allocation7], 4
          %s295 = int_to_ptr.vmem [resolvable:$true] %s294
          %300 = dma.hbm_to_vmem [thread:$0]  %s2, 512, %s295, [#allocation6], 128, 128, 8
        $region16: #{tpu_custom_call.1} parent=11 // pred_fallthru
          _
        // Predicated region
        $region17: #{tpu_custom_call.1} parent=11 // pred_check
          %p301 = pneg %p135
        $region18: #{tpu_custom_call.1} parent=11 // pred_check_branch
          %303 = sbr.rel (%p301) target = $region20
        $region19: #{tpu_custom_call.1} parent=11 // pred_region
          %s305 = ssub.s32 512, 512
          %306 = vsyncadd [#allocation9], %s305
          %s307 = sshll.u32 [#allocation8], 4
          %s308 = int_to_ptr.vmem [resolvable:$true] %s307
          %313 = dma.hbm_to_vmem [thread:$0]  %s3, 512, %s308, [#allocation9], 128, 128, 8
        $region20: #{tpu_custom_call.1} parent=11 // pred_fallthru
          _
        // Predicated region
        $region21: #{tpu_custom_call.1} parent=11 // pred_check
          %p314 = pneg %p156
        $region22: #{tpu_custom_call.1} parent=11 // pred_check_branch
          %316 = sbr.rel (%p314) target = $region24
        $region23: #{tpu_custom_call.1} parent=11 // pred_region
          %s318 = ssub.s32 512, 512
          %319 = vsyncadd [#allocation9], %s318
          %s320 = sshll.u32 [#allocation10], 4
          %s321 = int_to_ptr.vmem [resolvable:$true] %s320
          %326 = dma.hbm_to_vmem [thread:$0]  %s4, 512, %s321, [#allocation9], 128, 128, 8
        $region24: #{tpu_custom_call.1} parent=11 // pred_fallthru
          _
        // Predicated region
        $region25: #{tpu_custom_call.1} parent=11 // pred_check
          %p327 = pneg %p177
        $region26: #{tpu_custom_call.1} parent=11 // pred_check_branch
          %329 = sbr.rel (%p327) target = $region28
        $region27: #{tpu_custom_call.1} parent=11 // pred_region
          %s331 = ssub.s32 16, 16
          %332 = vsyncadd [#allocation12], %s331
          %s334 = sshll.u32 [#allocation11], 4
          %s335 = int_to_ptr.vmem [resolvable:$true] %s334
          %337 = dma.hbm_to_vmem [thread:$0]  %s5, 16, %s335, [#allocation12]
        $region28: #{tpu_custom_call.1} parent=11 // pred_fallthru
          _
        // Predicated region
        $region29: #{tpu_custom_call.1} parent=11 // pred_check
          %p338 = pneg %p198
        $region30: #{tpu_custom_call.1} parent=11 // pred_check_branch
          %340 = sbr.rel (%p338) target = $region32
        $region31: #{tpu_custom_call.1} parent=11 // pred_region
          %s342 = ssub.s32 16, 16
          %343 = vsyncadd [#allocation12], %s342
          %s345 = sshll.u32 [#allocation13], 4
          %s346 = int_to_ptr.vmem [resolvable:$true] %s345
          %348 = dma.hbm_to_vmem [thread:$0]  %s6, 16, %s346, [#allocation12]
        $region32: #{tpu_custom_call.1} parent=11 // pred_fallthru
          _
        // Predicated region
        $region33: #{tpu_custom_call.1} parent=11 // pred_check
          %p349 = pneg %p219
        $region34: #{tpu_custom_call.1} parent=11 // pred_check_branch
          %351 = sbr.rel (%p349) target = $region36
        $region35: #{tpu_custom_call.1} parent=11 // pred_region
          %s353 = ssub.s32 16, 16
          %354 = vsyncadd [#allocation15], %s353
          %s356 = sshll.u32 [#allocation14], 4
          %s357 = int_to_ptr.vmem [resolvable:$true] %s356
          %359 = dma.hbm_to_vmem [thread:$0]  %s7, 16, %s357, [#allocation15]
        $region36: #{tpu_custom_call.1} parent=11 // pred_fallthru
          _
        // Predicated region
        $region37: #{tpu_custom_call.1} parent=11 // pred_check
          %p360 = pneg %p245
        $region38: #{tpu_custom_call.1} parent=11 // pred_check_branch
          %362 = sbr.rel (%p360) target = $region40
        $region39: #{tpu_custom_call.1} parent=11 // pred_region
          %s364 = ssub.s32 32, 32
          %365 = vsyncadd [#allocation15], %s364
          %s366 = smul.addr %s37, 32
          %s367 = scalar_lea.hbm %s8, %s366
          %s369 = sshll.u32 [#allocation16], 4
          %s370 = int_to_ptr.vmem [resolvable:$true] %s369
          %372 = dma.hbm_to_vmem [thread:$0]  %s367, 32, %s370, [#allocation15]
        $region40: #{tpu_custom_call.1} parent=11 // pred_fallthru
          _
      $region12: #{tpu_custom_call.1} parent=5 // pred_fallthru
        _
      %p373 = scmp.lt.s32.totalorder %s27, 2
      // Predicated region
      $region41: #{tpu_custom_call.1} parent=5 // pred_check
        %p374 = pneg %p373
      $region42: #{tpu_custom_call.1} parent=5 // pred_check_branch
        %376 = sbr.rel (%p374) target = $region44
      $region43: #{tpu_custom_call.1} parent=5 // pred_region
        // Predicated region
        $region45: #{tpu_custom_call.1} parent=43 // pred_check
          %p377 = pneg %p61
        $region46: #{tpu_custom_call.1} parent=43 // pred_check_branch
          %379 = sbr.rel (%p377) target = $region48
        $region47: #{tpu_custom_call.1} parent=43 // pred_region
          %s380 = sand.u32 %s51, 1
          %s381 = scalar_lea.sflag [#allocation3], %s380
          %s382 = sand.u32 %s51, 1
          %s383 = smul.addr %s382, 8
          %s384 = scalar_lea.vmem [#allocation2], %s383
          %s386 = ssub.s32 128, 128
          %387 = vsyncadd %s381, %s386
          %s388 = sadd.s32 %s35, %s34
          %s389 = smul.addr %s388, 128
          %s390 = scalar_lea.hbm %s0, %s389
          %s392 = sshll.u32 %s384, 4
          %s393 = int_to_ptr.vmem [resolvable:$true] %s392
          %395 = dma.hbm_to_vmem [thread:$0]  %s390, 128, %s393, %s381
        $region48: #{tpu_custom_call.1} parent=43 // pred_fallthru
          _
        // Predicated region
        $region49: #{tpu_custom_call.1} parent=43 // pred_check
          %p396 = pneg %p87
        $region50: #{tpu_custom_call.1} parent=43 // pred_check_branch
          %398 = sbr.rel (%p396) target = $region52
        $region51: #{tpu_custom_call.1} parent=43 // pred_region
          %s399 = sand.u32 %s27, 1
          %s400 = scalar_lea.sflag [#allocation6], %s399
          %s401 = sand.u32 %s77, 1
          %s402 = smul.addr %s401, 8
          %s403 = scalar_lea.vmem [#allocation5], %s402
          %s405 = ssub.s32 128, 128
          %406 = vsyncadd %s400, %s405
          %s407 = smul.addr %s34, 128
          %s408 = scalar_lea.hbm %s1, %s407
          %s410 = sshll.u32 %s403, 4
          %s411 = int_to_ptr.vmem [resolvable:$true] %s410
          %413 = dma.hbm_to_vmem [thread:$0]  %s408, 128, %s411, %s400
        $region52: #{tpu_custom_call.1} parent=43 // pred_fallthru
          _
      $region44: #{tpu_custom_call.1} parent=5 // pred_fallthru
        _
      %p414 = scmp.le.s32.totalorder 1, %s27
      %p415 = scmp.lt.s32.totalorder %s27, 3
      %p416 = pnand %p414, %p415
      %p417 = pneg %p416
      // Predicated region
      $region53: #{tpu_custom_call.1} parent=5 // pred_check
        _
      $region54: #{tpu_custom_call.1} parent=5 // pred_check_branch
        %419 = sbr.rel (%p416) target = $region56
      $region55: #{tpu_custom_call.1} parent=5 // pred_region
        %s420 = ssub.s32 %s27, 1
        %s421 = sand.u32 %s54, 1
        %s422 = scalar_lea.sflag [#allocation3], %s421
        %s423 = sand.u32 %s54, 1
        %s424 = smul.addr %s423, 8
        %s425 = scalar_lea.vmem [#allocation2], %s424
        // Predicated region
        $region57: #{tpu_custom_call.1} parent=55 // pred_check
          %p426 = pneg %p67
        $region58: #{tpu_custom_call.1} parent=55 // pred_check_branch
          %428 = sbr.rel (%p426) target = $region60
        $region59: #{tpu_custom_call.1} parent=55 // pred_region
          %429 = dma.done %s422, 128
        $region60: #{tpu_custom_call.1} parent=55 // pred_fallthru
          _
        %s430 = sand.u32 %s32, 1
        %s431 = scalar_lea.sflag [#allocation6], %s430
        %s432 = sand.u32 %s80, 1
        %s433 = smul.addr %s432, 8
        %s434 = scalar_lea.vmem [#allocation5], %s433
        // Predicated region
        $region61: #{tpu_custom_call.1} parent=55 // pred_check
          %p435 = pneg %p93
        $region62: #{tpu_custom_call.1} parent=55 // pred_check_branch
          %437 = sbr.rel (%p435) target = $region64
        $region63: #{tpu_custom_call.1} parent=55 // pred_region
          %438 = dma.done %s431, 128
        $region64: #{tpu_custom_call.1} parent=55 // pred_fallthru
          _
        // Predicated region
        $region65: #{tpu_custom_call.1} parent=55 // pred_check
          %p439 = pneg %p114
        $region66: #{tpu_custom_call.1} parent=55 // pred_check_branch
          %441 = sbr.rel (%p439) target = $region68
        $region67: #{tpu_custom_call.1} parent=55 // pred_region
          %442 = dma.done [#allocation6], 512
        $region68: #{tpu_custom_call.1} parent=55 // pred_fallthru
          _
        // Predicated region
        $region69: #{tpu_custom_call.1} parent=55 // pred_check
          %p443 = pneg %p135
        $region70: #{tpu_custom_call.1} parent=55 // pred_check_branch
          %445 = sbr.rel (%p443) target = $region72
        $region71: #{tpu_custom_call.1} parent=55 // pred_region
          %446 = dma.done [#allocation9], 512
        $region72: #{tpu_custom_call.1} parent=55 // pred_fallthru
          _
        // Predicated region
        $region73: #{tpu_custom_call.1} parent=55 // pred_check
          %p447 = pneg %p156
        $region74: #{tpu_custom_call.1} parent=55 // pred_check_branch
          %449 = sbr.rel (%p447) target = $region76
        $region75: #{tpu_custom_call.1} parent=55 // pred_region
          %450 = dma.done [#allocation9], 512
        $region76: #{tpu_custom_call.1} parent=55 // pred_fallthru
          _
        // Predicated region
        $region77: #{tpu_custom_call.1} parent=55 // pred_check
          %p451 = pneg %p177
        $region78: #{tpu_custom_call.1} parent=55 // pred_check_branch
          %453 = sbr.rel (%p451) target = $region80
        $region79: #{tpu_custom_call.1} parent=55 // pred_region
          %454 = dma.done [#allocation12], 16
        $region80: #{tpu_custom_call.1} parent=55 // pred_fallthru
          _
        // Predicated region
        $region81: #{tpu_custom_call.1} parent=55 // pred_check
          %p455 = pneg %p198
        $region82: #{tpu_custom_call.1} parent=55 // pred_check_branch
          %457 = sbr.rel (%p455) target = $region84
        $region83: #{tpu_custom_call.1} parent=55 // pred_region
          %458 = dma.done [#allocation12], 16
        $region84: #{tpu_custom_call.1} parent=55 // pred_fallthru
          _
        // Predicated region
        $region85: #{tpu_custom_call.1} parent=55 // pred_check
          %p459 = pneg %p219
        $region86: #{tpu_custom_call.1} parent=55 // pred_check_branch
          %461 = sbr.rel (%p459) target = $region88
        $region87: #{tpu_custom_call.1} parent=55 // pred_region
          %462 = dma.done [#allocation15], 16
        $region88: #{tpu_custom_call.1} parent=55 // pred_fallthru
          _
        // Predicated region
        $region89: #{tpu_custom_call.1} parent=55 // pred_check
          %p463 = pneg %p245
        $region90: #{tpu_custom_call.1} parent=55 // pred_check_branch
          %465 = sbr.rel (%p463) target = $region92
        $region91: #{tpu_custom_call.1} parent=55 // pred_region
          %466 = dma.done [#allocation15], 32
        $region92: #{tpu_custom_call.1} parent=55 // pred_fallthru
          _
        %s467 = sand.u32 %s54, 1
        %s468 = scalar_lea.sflag [#allocation3], %s467
        %s469 = sand.u32 %s54, 1
        %s470 = smul.addr %s469, 8
        %s471 = scalar_lea.vmem [#allocation2], %s470
        %p472 = pneg %p67
        %p473 = pneg %p64
        %s474 = sand.u32 %s32, 1
        %s475 = scalar_lea.sflag [#allocation6], %s474
        %s476 = sand.u32 %s80, 1
        %s477 = smul.addr %s476, 8
        %s478 = scalar_lea.vmem [#allocation5], %s477
        %p479 = pneg %p93
        %p480 = pneg %p90
        %p481 = pneg %p114
        %p482 = pneg %p111
        %p483 = pneg %p135
        %p484 = pneg %p132
        %p485 = pneg %p156
        %p486 = pneg %p153
        %p487 = pneg %p177
        %p488 = pneg %p174
        %p489 = pneg %p198
        %p490 = pneg %p195
        %p491 = pneg %p219
        %p492 = pneg %p216
        %p493 = pneg %p245
        %p494 = pneg %p242
        %p495 = pneg %p273
        %p496 = pneg %p270
        %s497 = sand.u32 %s260, 1
        %s498 = scalar_lea.sflag [#allocation4], %s497
        %s499 = sand.u32 %s260, 1
        %s500 = smul.addr %s499, 8
        %s501 = scalar_lea.vmem [#allocation17], %s500
        %v502 = vld [vmem:[%s425] sm:$0xff]
        %v503 = vld [vmem:[%s434] sm:$0xff]
        %v504 = vld [vmem:[#allocation7] sm:$0xff]
        %v505 = vld [vmem:[#allocation7 + $0x8] sm:$0xff]
        %v506 = vld [vmem:[#allocation7 + $0x10] sm:$0xff]
        %v507 = vld [vmem:[#allocation7 + $0x18] sm:$0xff]
        %v508 = vld [vmem:[#allocation11] sm:$0x1]
        %v510 = vlaneseq
        %v511 = vshrl.u32 %v510, 7
        %v512 = vsub.s32 0, %v511
        %v513 = vrot.slane %v508, %v512
        %vm515 = vcmask 261120
        %v517 = vsel %vm515, %v502, 0
        %519 = vmatprep.subr.mxu0 0.0
        %520 = vmatpush1.msra.mxu0 %v504
        %521 = vmatprep.subr.mxu0 0.0
        %522 = vmatpush1.msra.mxu0 %v505
        %523 = vmatprep.subr.mxu0 0.0
        %524 = vmatpush1.msra.mxu0 %v506
        %525 = vmatprep.subr.mxu0 0.0
        %526 = vmatpush1.msra.mxu0 %v507
        %527 = vmatprep.subr.mxu0 0.0
        %528 = vmatpush1.msra.mxu0 0.0
        %529 = vmatprep.subr.mxu0 0.0
        %530 = vmatpush1.msra.mxu0 0.0
        %531 = vmatprep.subr.mxu0 0.0
        %532 = vmatpush1.msra.mxu0 0.0
        %533 = vmatprep.subr.mxu0 0.0
        %534 = vmatpush1.msra.mxu0 0.0
        %535 = vmatprep.subr.mxu0 0.0
        %536 = vmatpush1.msra.mxu0 0.0
        %537 = vmatprep.subr.mxu0 0.0
        %538 = vmatpush1.msra.mxu0 0.0
        %539 = vmatprep.subr.mxu0 0.0
        %540 = vmatpush1.msra.mxu0 0.0
        %541 = vmatprep.subr.mxu0 0.0
        %542 = vmatpush1.msra.mxu0 0.0
        %543 = vmatprep.subr.mxu0 0.0
        %544 = vmatpush1.msra.mxu0 0.0
        %545 = vmatprep.subr.mxu0 0.0
        %546 = vmatpush1.msra.mxu0 0.0
        %547 = vmatprep.subr.mxu0 0.0
        %548 = vmatpush1.msra.mxu0 0.0
        %549 = vmatprep.subr.mxu0 0.0
        %550 = vmatpush1.msra.mxu0 0.0
        %551 = vmatprep.subr.mxu0 0.0
        %552 = vmatpush1.msra.mxu0 0.0
        %553 = vmatprep.subr.mxu0 0.0
        %554 = vmatpush1.msra.mxu0 0.0
        %555 = vmatprep.subr.mxu0 0.0
        %556 = vmatpush1.msra.mxu0 0.0
        %557 = vmatprep.subr.mxu0 0.0
        %558 = vmatpush1.msra.mxu0 0.0
        %559 = vmatprep.subr.mxu0 0.0
        %560 = vmatpush1.msra.mxu0 0.0
        %561 = vmatprep.subr.mxu0 0.0
        %562 = vmatpush1.msra.mxu0 0.0
        %563 = vmatprep.subr.mxu0 0.0
        %564 = vmatpush1.msra.mxu0 0.0
        %565 = vmatprep.subr.mxu0 0.0
        %566 = vmatpush1.msra.mxu0 0.0
        %567 = vmatprep.subr.mxu0 0.0
        %568 = vmatpush1.msra.mxu0 0.0
        %569 = vmatprep.subr.mxu0 0.0
        %570 = vmatpush1.msra.mxu0 0.0
        %571 = vmatprep.subr.mxu0 0.0
        %572 = vmatpush1.msra.mxu0 0.0
        %573 = vmatprep.subr.mxu0 0.0
        %574 = vmatpush1.msra.mxu0 0.0
        %575 = vmatprep.subr.mxu0 0.0
        %576 = vmatpush1.msra.mxu0 0.0
        %577 = vmatprep.subr.mxu0 0.0
        %578 = vmatpush1.msra.mxu0 0.0
        %579 = vmatprep.subr.mxu0 0.0
        %580 = vmatpush1.msra.mxu0 0.0
        %581 = vmatprep.subr.mxu0 0.0
        %582 = vmatpush1.msra.mxu0 0.0
        %583 = vmatprep.mubr.f32.mxu0 0.0
        %584 = vmatmul.mubr.f32.gmra.mrb[0].mxu0 %v517
        %v585 = vpop.f32.mrb[0].mxu0
        %v586 = vadd.f32 %v513, %v585
        %v587 = vpop.f32.mrb[0].mxu0
        %588 = vdwg.mxu0
        %v589 = vmul.f32 %v586, 0.35355338
        %v590 = vld [vmem:[#allocation8] sm:$0xff]
        %v591 = vld [vmem:[#allocation8 + $0x8] sm:$0xff]
        %v592 = vld [vmem:[#allocation8 + $0x10] sm:$0xff]
        %v593 = vld [vmem:[#allocation8 + $0x18] sm:$0xff]
        %v594 = vld [vmem:[#allocation13] sm:$0x1]
        %v596 = vlaneseq
        %v597 = vshrl.u32 %v596, 7
        %v598 = vsub.s32 0, %v597
        %v599 = vrot.slane %v594, %v598
        %v602 = vsel %vm515, %v503, 0
        %604 = vmatprep.subr.mxu0 0.0
        %605 = vmatpush1.msra.mxu0 %v590
        %606 = vmatprep.subr.mxu0 0.0
        %607 = vmatpush1.msra.mxu0 %v591
        %608 = vmatprep.subr.mxu0 0.0
        %609 = vmatpush1.msra.mxu0 %v592
        %610 = vmatprep.subr.mxu0 0.0
        %611 = vmatpush1.msra.mxu0 %v593
        %612 = vmatprep.subr.mxu0 0.0
        %613 = vmatpush1.msra.mxu0 0.0
        %614 = vmatprep.subr.mxu0 0.0
        %615 = vmatpush1.msra.mxu0 0.0
        %616 = vmatprep.subr.mxu0 0.0
        %617 = vmatpush1.msra.mxu0 0.0
        %618 = vmatprep.subr.mxu0 0.0
        %619 = vmatpush1.msra.mxu0 0.0
        %620 = vmatprep.subr.mxu0 0.0
        %621 = vmatpush1.msra.mxu0 0.0
        %622 = vmatprep.subr.mxu0 0.0
        %623 = vmatpush1.msra.mxu0 0.0
        %624 = vmatprep.subr.mxu0 0.0
        %625 = vmatpush1.msra.mxu0 0.0
        %626 = vmatprep.subr.mxu0 0.0
        %627 = vmatpush1.msra.mxu0 0.0
        %628 = vmatprep.subr.mxu0 0.0
        %629 = vmatpush1.msra.mxu0 0.0
        %630 = vmatprep.subr.mxu0 0.0
        %631 = vmatpush1.msra.mxu0 0.0
        %632 = vmatprep.subr.mxu0 0.0
        %633 = vmatpush1.msra.mxu0 0.0
        %634 = vmatprep.subr.mxu0 0.0
        %635 = vmatpush1.msra.mxu0 0.0
        %636 = vmatprep.subr.mxu0 0.0
        %637 = vmatpush1.msra.mxu0 0.0
        %638 = vmatprep.subr.mxu0 0.0
        %639 = vmatpush1.msra.mxu0 0.0
        %640 = vmatprep.subr.mxu0 0.0
        %641 = vmatpush1.msra.mxu0 0.0
        %642 = vmatprep.subr.mxu0 0.0
        %643 = vmatpush1.msra.mxu0 0.0
        %644 = vmatprep.subr.mxu0 0.0
        %645 = vmatpush1.msra.mxu0 0.0
        %646 = vmatprep.subr.mxu0 0.0
        %647 = vmatpush1.msra.mxu0 0.0
        %648 = vmatprep.subr.mxu0 0.0
        %649 = vmatpush1.msra.mxu0 0.0
        %650 = vmatprep.subr.mxu0 0.0
        %651 = vmatpush1.msra.mxu0 0.0
        %652 = vmatprep.subr.mxu0 0.0
        %653 = vmatpush1.msra.mxu0 0.0
        %654 = vmatprep.subr.mxu0 0.0
        %655 = vmatpush1.msra.mxu0 0.0
        %656 = vmatprep.subr.mxu0 0.0
        %657 = vmatpush1.msra.mxu0 0.0
        %658 = vmatprep.subr.mxu0 0.0
        %659 = vmatpush1.msra.mxu0 0.0
        %660 = vmatprep.subr.mxu0 0.0
        %661 = vmatpush1.msra.mxu0 0.0
        %662 = vmatprep.subr.mxu0 0.0
        %663 = vmatpush1.msra.mxu0 0.0
        %664 = vmatprep.subr.mxu0 0.0
        %665 = vmatpush1.msra.mxu0 0.0
        %666 = vmatprep.subr.mxu0 0.0
        %667 = vmatpush1.msra.mxu0 0.0
        %668 = vmatprep.mubr.f32.mxu0 0.0
        %669 = vmatmul.mubr.f32.gmra.mrb[0].mxu0 %v602
        %v670 = vpop.f32.mrb[0].mxu0
        %v671 = vadd.f32 %v599, %v670
        %v672 = vpop.f32.mrb[0].mxu0
        %673 = vdwg.mxu0
        %v674 = vld [vmem:[#allocation10] sm:$0xff]
        %v675 = vld [vmem:[#allocation10 + $0x8] sm:$0xff]
        %v676 = vld [vmem:[#allocation10 + $0x10] sm:$0xff]
        %v677 = vld [vmem:[#allocation10 + $0x18] sm:$0xff]
        %v678 = vld [vmem:[#allocation14] sm:$0x1]
        %v680 = vlaneseq
        %v681 = vshrl.u32 %v680, 7
        %v682 = vsub.s32 0, %v681
        %v683 = vrot.slane %v678, %v682
        %685 = vmatprep.subr.mxu0 0.0
        %686 = vmatpush1.msra.mxu0 %v674
        %687 = vmatprep.subr.mxu0 0.0
        %688 = vmatpush1.msra.mxu0 %v675
        %689 = vmatprep.subr.mxu0 0.0
        %690 = vmatpush1.msra.mxu0 %v676
        %691 = vmatprep.subr.mxu0 0.0
        %692 = vmatpush1.msra.mxu0 %v677
        %693 = vmatprep.subr.mxu0 0.0
        %694 = vmatpush1.msra.mxu0 0.0
        %695 = vmatprep.subr.mxu0 0.0
        %696 = vmatpush1.msra.mxu0 0.0
        %697 = vmatprep.subr.mxu0 0.0
        %698 = vmatpush1.msra.mxu0 0.0
        %699 = vmatprep.subr.mxu0 0.0
        %700 = vmatpush1.msra.mxu0 0.0
        %701 = vmatprep.subr.mxu0 0.0
        %702 = vmatpush1.msra.mxu0 0.0
        %703 = vmatprep.subr.mxu0 0.0
        %704 = vmatpush1.msra.mxu0 0.0
        %705 = vmatprep.subr.mxu0 0.0
        %706 = vmatpush1.msra.mxu0 0.0
        %707 = vmatprep.subr.mxu0 0.0
        %708 = vmatpush1.msra.mxu0 0.0
        %709 = vmatprep.subr.mxu0 0.0
        %710 = vmatpush1.msra.mxu0 0.0
        %711 = vmatprep.subr.mxu0 0.0
        %712 = vmatpush1.msra.mxu0 0.0
        %713 = vmatprep.subr.mxu0 0.0
        %714 = vmatpush1.msra.mxu0 0.0
        %715 = vmatprep.subr.mxu0 0.0
        %716 = vmatpush1.msra.mxu0 0.0
        %717 = vmatprep.subr.mxu0 0.0
        %718 = vmatpush1.msra.mxu0 0.0
        %719 = vmatprep.subr.mxu0 0.0
        %720 = vmatpush1.msra.mxu0 0.0
        %721 = vmatprep.subr.mxu0 0.0
        %722 = vmatpush1.msra.mxu0 0.0
        %723 = vmatprep.subr.mxu0 0.0
        %724 = vmatpush1.msra.mxu0 0.0
        %725 = vmatprep.subr.mxu0 0.0
        %726 = vmatpush1.msra.mxu0 0.0
        %727 = vmatprep.subr.mxu0 0.0
        %728 = vmatpush1.msra.mxu0 0.0
        %729 = vmatprep.subr.mxu0 0.0
        %730 = vmatpush1.msra.mxu0 0.0
        %731 = vmatprep.subr.mxu0 0.0
        %732 = vmatpush1.msra.mxu0 0.0
        %733 = vmatprep.subr.mxu0 0.0
        %734 = vmatpush1.msra.mxu0 0.0
        %735 = vmatprep.subr.mxu0 0.0
        %736 = vmatpush1.msra.mxu0 0.0
        %737 = vmatprep.subr.mxu0 0.0
        %738 = vmatpush1.msra.mxu0 0.0
        %739 = vmatprep.subr.mxu0 0.0
        %740 = vmatpush1.msra.mxu0 0.0
        %741 = vmatprep.subr.mxu0 0.0
        %742 = vmatpush1.msra.mxu0 0.0
        %743 = vmatprep.subr.mxu0 0.0
        %744 = vmatpush1.msra.mxu0 0.0
        %745 = vmatprep.subr.mxu0 0.0
        %746 = vmatpush1.msra.mxu0 0.0
        %747 = vmatprep.subr.mxu0 0.0
        %748 = vmatpush1.msra.mxu0 0.0
        %749 = vmatprep.mubr.f32.mxu0 0.0
        %750 = vmatmul.mubr.f32.gmra.mrb[0].mxu0 %v602
        %v751 = vpop.f32.mrb[0].mxu0
        %v752 = vadd.f32 %v683, %v751
        %v753 = vpop.f32.mrb[0].mxu0
        %754 = vdwg.mxu0
        %756 = vrot.lane.b32.xlu0 %v589, 120
        %v757 = vpop.permute.xlu0 %756
        %758 = vrot.lane.b32.xlu0 %v589, 112
        %v759 = vpop.permute.xlu0 %758
        %760 = vrot.lane.b32.xlu0 %v589, 104
        %v761 = vpop.permute.xlu0 %760
        %763 = vrot.lane.b32.xlu0 %v671, 120
        %v764 = vpop.permute.xlu0 %763
        %766 = vrot.lane.b32.xlu0 %v671, 112
        %v767 = vpop.permute.xlu0 %766
        %769 = vrot.lane.b32.xlu0 %v671, 104
        %v770 = vpop.permute.xlu0 %769
        %773 = vrot.lane.b32.xlu0 %v752, 120
        %v774 = vpop.permute.xlu0 %773
        %776 = vrot.lane.b32.xlu0 %v752, 112
        %v777 = vpop.permute.xlu0 %776
        %779 = vrot.lane.b32.xlu0 %v752, 104
        %v780 = vpop.permute.xlu0 %779
        %782 = vxpose.xlu0.b32.start [1/16] %v671, 128
        %783 = vxpose.xlu0.b32.cont [2/16] 0.0, 128
        %784 = vxpose.xlu0.b32.cont [3/16] 0.0, 128
        %785 = vxpose.xlu0.b32.cont [4/16] 0.0, 128
        %786 = vxpose.xlu0.b32.cont [5/16] 0.0, 128
        %787 = vxpose.xlu0.b32.cont [6/16] 0.0, 128
        %788 = vxpose.xlu0.b32.cont [7/16] 0.0, 128
        %789 = vxpose.xlu0.b32.cont [8/16] 0.0, 128
        %790 = vxpose.xlu0.b32.cont [9/16] 0.0, 128
        %791 = vxpose.xlu0.b32.cont [10/16] 0.0, 128
        %792 = vxpose.xlu0.b32.cont [11/16] 0.0, 128
        %793 = vxpose.xlu0.b32.cont [12/16] 0.0, 128
        %794 = vxpose.xlu0.b32.cont [13/16] 0.0, 128
        %795 = vxpose.xlu0.b32.cont [14/16] 0.0, 128
        %796 = vxpose.xlu0.b32.cont [15/16] 0.0, 128
        %797 = vxpose.xlu0.b32.end [16/16] 0.0, 128
        %v798 = vpop.trf.xlu0
        %v799 = vpop.trf.xlu0
        %v800 = vpop.trf.xlu0
        %v801 = vpop.trf.xlu0
        %v802 = vpop.trf.xlu0
        %v803 = vpop.trf.xlu0
        %v804 = vpop.trf.xlu0
        %v805 = vpop.trf.xlu0
        %v806 = vpop.trf.xlu0
        %v807 = vpop.trf.xlu0
        %v808 = vpop.trf.xlu0
        %v809 = vpop.trf.xlu0
        %v810 = vpop.trf.xlu0
        %v811 = vpop.trf.xlu0
        %v812 = vpop.trf.xlu0
        %v813 = vpop.trf.xlu0
        %814 = vxpose.xlu0.b32.start [1/16] %v764, 128
        %815 = vxpose.xlu0.b32.cont [2/16] 0.0, 128
        %816 = vxpose.xlu0.b32.cont [3/16] 0.0, 128
        %817 = vxpose.xlu0.b32.cont [4/16] 0.0, 128
        %818 = vxpose.xlu0.b32.cont [5/16] 0.0, 128
        %819 = vxpose.xlu0.b32.cont [6/16] 0.0, 128
        %820 = vxpose.xlu0.b32.cont [7/16] 0.0, 128
        %821 = vxpose.xlu0.b32.cont [8/16] 0.0, 128
        %822 = vxpose.xlu0.b32.cont [9/16] 0.0, 128
        %823 = vxpose.xlu0.b32.cont [10/16] 0.0, 128
        %824 = vxpose.xlu0.b32.cont [11/16] 0.0, 128
        %825 = vxpose.xlu0.b32.cont [12/16] 0.0, 128
        %826 = vxpose.xlu0.b32.cont [13/16] 0.0, 128
        %827 = vxpose.xlu0.b32.cont [14/16] 0.0, 128
        %828 = vxpose.xlu0.b32.cont [15/16] 0.0, 128
        %829 = vxpose.xlu0.b32.end [16/16] 0.0, 128
        %v830 = vpop.trf.xlu0
        %v831 = vpop.trf.xlu0
        %v832 = vpop.trf.xlu0
        %v833 = vpop.trf.xlu0
        %v834 = vpop.trf.xlu0
        %v835 = vpop.trf.xlu0
        %v836 = vpop.trf.xlu0
        %v837 = vpop.trf.xlu0
        %v838 = vpop.trf.xlu0
        %v839 = vpop.trf.xlu0
        %v840 = vpop.trf.xlu0
        %v841 = vpop.trf.xlu0
        %v842 = vpop.trf.xlu0
        %v843 = vpop.trf.xlu0
        %v844 = vpop.trf.xlu0
        %v845 = vpop.trf.xlu0
        %846 = vxpose.xlu0.b32.start [1/16] %v767, 128
        %847 = vxpose.xlu0.b32.cont [2/16] 0.0, 128
        %848 = vxpose.xlu0.b32.cont [3/16] 0.0, 128
        %849 = vxpose.xlu0.b32.cont [4/16] 0.0, 128
        %850 = vxpose.xlu0.b32.cont [5/16] 0.0, 128
        %851 = vxpose.xlu0.b32.cont [6/16] 0.0, 128
        %852 = vxpose.xlu0.b32.cont [7/16] 0.0, 128
        %853 = vxpose.xlu0.b32.cont [8/16] 0.0, 128
        %854 = vxpose.xlu0.b32.cont [9/16] 0.0, 128
        %855 = vxpose.xlu0.b32.cont [10/16] 0.0, 128
        %856 = vxpose.xlu0.b32.cont [11/16] 0.0, 128
        %857 = vxpose.xlu0.b32.cont [12/16] 0.0, 128
        %858 = vxpose.xlu0.b32.cont [13/16] 0.0, 128
        %859 = vxpose.xlu0.b32.cont [14/16] 0.0, 128
        %860 = vxpose.xlu0.b32.cont [15/16] 0.0, 128
        %861 = vxpose.xlu0.b32.end [16/16] 0.0, 128
        %v862 = vpop.trf.xlu0
        %v863 = vpop.trf.xlu0
        %v864 = vpop.trf.xlu0
        %v865 = vpop.trf.xlu0
        %v866 = vpop.trf.xlu0
        %v867 = vpop.trf.xlu0
        %v868 = vpop.trf.xlu0
        %v869 = vpop.trf.xlu0
        %v870 = vpop.trf.xlu0
        %v871 = vpop.trf.xlu0
        %v872 = vpop.trf.xlu0
        %v873 = vpop.trf.xlu0
        %v874 = vpop.trf.xlu0
        %v875 = vpop.trf.xlu0
        %v876 = vpop.trf.xlu0
        %v877 = vpop.trf.xlu0
        %878 = vxpose.xlu0.b32.start [1/16] %v770, 128
        %879 = vxpose.xlu0.b32.cont [2/16] 0.0, 128
        %880 = vxpose.xlu0.b32.cont [3/16] 0.0, 128
        %881 = vxpose.xlu0.b32.cont [4/16] 0.0, 128
        %882 = vxpose.xlu0.b32.cont [5/16] 0.0, 128
        %883 = vxpose.xlu0.b32.cont [6/16] 0.0, 128
        %884 = vxpose.xlu0.b32.cont [7/16] 0.0, 128
        %885 = vxpose.xlu0.b32.cont [8/16] 0.0, 128
        %886 = vxpose.xlu0.b32.cont [9/16] 0.0, 128
        %887 = vxpose.xlu0.b32.cont [10/16] 0.0, 128
        %888 = vxpose.xlu0.b32.cont [11/16] 0.0, 128
        %889 = vxpose.xlu0.b32.cont [12/16] 0.0, 128
        %890 = vxpose.xlu0.b32.cont [13/16] 0.0, 128
        %891 = vxpose.xlu0.b32.cont [14/16] 0.0, 128
        %892 = vxpose.xlu0.b32.cont [15/16] 0.0, 128
        %893 = vxpose.xlu0.b32.end [16/16] 0.0, 128
        %v894 = vpop.trf.xlu0
        %v895 = vpop.trf.xlu0
        %v896 = vpop.trf.xlu0
        %v897 = vpop.trf.xlu0
        %v898 = vpop.trf.xlu0
        %v899 = vpop.trf.xlu0
        %v900 = vpop.trf.xlu0
        %v901 = vpop.trf.xlu0
        %v902 = vpop.trf.xlu0
        %v903 = vpop.trf.xlu0
        %v904 = vpop.trf.xlu0
        %v905 = vpop.trf.xlu0
        %v906 = vpop.trf.xlu0
        %v907 = vpop.trf.xlu0
        %v908 = vpop.trf.xlu0
        %v909 = vpop.trf.xlu0
        %vm910 = vcmask 64512
        %v911 = vsel %vm910, %v589, 0
        %913 = vmatprep.subr.mxu0 0.0
        %914 = vmatpush1.msra.mxu0 %v798
        %915 = vmatprep.subr.mxu0 0.0
        %916 = vmatpush1.msra.mxu0 0.0
        %917 = vmatprep.subr.mxu0 0.0
        %918 = vmatpush1.msra.mxu0 0.0
        %919 = vmatprep.subr.mxu0 0.0
        %920 = vmatpush1.msra.mxu0 0.0
        %921 = vmatprep.subr.mxu0 0.0
        %922 = vmatpush1.msra.mxu0 0.0
        %923 = vmatprep.subr.mxu0 0.0
        %924 = vmatpush1.msra.mxu0 0.0
        %925 = vmatprep.subr.mxu0 0.0
        %926 = vmatpush1.msra.mxu0 0.0
        %927 = vmatprep.subr.mxu0 0.0
        %928 = vmatpush1.msra.mxu0 0.0
        %929 = vmatprep.subr.mxu0 0.0
        %930 = vmatpush1.msra.mxu0 0.0
        %931 = vmatprep.subr.mxu0 0.0
        %932 = vmatpush1.msra.mxu0 0.0
        %933 = vmatprep.subr.mxu0 0.0
        %934 = vmatpush1.msra.mxu0 0.0
        %935 = vmatprep.subr.mxu0 0.0
        %936 = vmatpush1.msra.mxu0 0.0
        %937 = vmatprep.subr.mxu0 0.0
        %938 = vmatpush1.msra.mxu0 0.0
        %939 = vmatprep.subr.mxu0 0.0
        %940 = vmatpush1.msra.mxu0 0.0
        %941 = vmatprep.subr.mxu0 0.0
        %942 = vmatpush1.msra.mxu0 0.0
        %943 = vmatprep.subr.mxu0 0.0
        %944 = vmatpush1.msra.mxu0 0.0
        %945 = vmatprep.subr.mxu0 0.0
        %946 = vmatpush1.msra.mxu0 0.0
        %947 = vmatprep.subr.mxu0 0.0
        %948 = vmatpush1.msra.mxu0 0.0
        %949 = vmatprep.subr.mxu0 0.0
        %950 = vmatpush1.msra.mxu0 0.0
        %951 = vmatprep.subr.mxu0 0.0
        %952 = vmatpush1.msra.mxu0 0.0
        %953 = vmatprep.subr.mxu0 0.0
        %954 = vmatpush1.msra.mxu0 0.0
        %955 = vmatprep.subr.mxu0 0.0
        %956 = vmatpush1.msra.mxu0 0.0
        %957 = vmatprep.subr.mxu0 0.0
        %958 = vmatpush1.msra.mxu0 0.0
        %959 = vmatprep.subr.mxu0 0.0
        %960 = vmatpush1.msra.mxu0 0.0
        %961 = vmatprep.subr.mxu0 0.0
        %962 = vmatpush1.msra.mxu0 0.0
        %963 = vmatprep.subr.mxu0 0.0
        %964 = vmatpush1.msra.mxu0 0.0
        %965 = vmatprep.subr.mxu0 0.0
        %966 = vmatpush1.msra.mxu0 0.0
        %967 = vmatprep.subr.mxu0 0.0
        %968 = vmatpush1.msra.mxu0 0.0
        %969 = vmatprep.subr.mxu0 0.0
        %970 = vmatpush1.msra.mxu0 0.0
        %971 = vmatprep.subr.mxu0 0.0
        %972 = vmatpush1.msra.mxu0 0.0
        %973 = vmatprep.subr.mxu0 0.0
        %974 = vmatpush1.msra.mxu0 0.0
        %975 = vmatprep.subr.mxu0 0.0
        %976 = vmatpush1.msra.mxu0 0.0
        %977 = vmatprep.mubr.f32.mxu0 0.0
        %978 = vmatmul.mubr.f32.gmra.mrb[0].mxu0 %v911
        %v979 = vpop.f32.mrb[0].mxu0
        %v980 = vadd.f32 0.0, %v979
        %v981 = vpop.f32.mrb[0].mxu0
        %982 = vdwg.mxu0
        %v983 = vsel %vm910, %v757, 0
        %985 = vmatprep.subr.mxu0 0.0
        %986 = vmatpush1.msra.mxu0 %v830
        %987 = vmatprep.subr.mxu0 0.0
        %988 = vmatpush1.msra.mxu0 0.0
        %989 = vmatprep.subr.mxu0 0.0
        %990 = vmatpush1.msra.mxu0 0.0
        %991 = vmatprep.subr.mxu0 0.0
        %992 = vmatpush1.msra.mxu0 0.0
        %993 = vmatprep.subr.mxu0 0.0
        %994 = vmatpush1.msra.mxu0 0.0
        %995 = vmatprep.subr.mxu0 0.0
        %996 = vmatpush1.msra.mxu0 0.0
        %997 = vmatprep.subr.mxu0 0.0
        %998 = vmatpush1.msra.mxu0 0.0
        %999 = vmatprep.subr.mxu0 0.0
        %1000 = vmatpush1.msra.mxu0 0.0
        %1001 = vmatprep.subr.mxu0 0.0
        %1002 = vmatpush1.msra.mxu0 0.0
        %1003 = vmatprep.subr.mxu0 0.0
        %1004 = vmatpush1.msra.mxu0 0.0
        %1005 = vmatprep.subr.mxu0 0.0
        %1006 = vmatpush1.msra.mxu0 0.0
        %1007 = vmatprep.subr.mxu0 0.0
        %1008 = vmatpush1.msra.mxu0 0.0
        %1009 = vmatprep.subr.mxu0 0.0
        %1010 = vmatpush1.msra.mxu0 0.0
        %1011 = vmatprep.subr.mxu0 0.0
        %1012 = vmatpush1.msra.mxu0 0.0
        %1013 = vmatprep.subr.mxu0 0.0
        %1014 = vmatpush1.msra.mxu0 0.0
        %1015 = vmatprep.subr.mxu0 0.0
        %1016 = vmatpush1.msra.mxu0 0.0
        %1017 = vmatprep.subr.mxu0 0.0
        %1018 = vmatpush1.msra.mxu0 0.0
        %1019 = vmatprep.subr.mxu0 0.0
        %1020 = vmatpush1.msra.mxu0 0.0
        %1021 = vmatprep.subr.mxu0 0.0
        %1022 = vmatpush1.msra.mxu0 0.0
        %1023 = vmatprep.subr.mxu0 0.0
        %1024 = vmatpush1.msra.mxu0 0.0
        %1025 = vmatprep.subr.mxu0 0.0
        %1026 = vmatpush1.msra.mxu0 0.0
        %1027 = vmatprep.subr.mxu0 0.0
        %1028 = vmatpush1.msra.mxu0 0.0
        %1029 = vmatprep.subr.mxu0 0.0
        %1030 = vmatpush1.msra.mxu0 0.0
        %1031 = vmatprep.subr.mxu0 0.0
        %1032 = vmatpush1.msra.mxu0 0.0
        %1033 = vmatprep.subr.mxu0 0.0
        %1034 = vmatpush1.msra.mxu0 0.0
        %1035 = vmatprep.subr.mxu0 0.0
        %1036 = vmatpush1.msra.mxu0 0.0
        %1037 = vmatprep.subr.mxu0 0.0
        %1038 = vmatpush1.msra.mxu0 0.0
        %1039 = vmatprep.subr.mxu0 0.0
        %1040 = vmatpush1.msra.mxu0 0.0
        %1041 = vmatprep.subr.mxu0 0.0
        %1042 = vmatpush1.msra.mxu0 0.0
        %1043 = vmatprep.subr.mxu0 0.0
        %1044 = vmatpush1.msra.mxu0 0.0
        %1045 = vmatprep.subr.mxu0 0.0
        %1046 = vmatpush1.msra.mxu0 0.0
        %1047 = vmatprep.subr.mxu0 0.0
        %1048 = vmatpush1.msra.mxu0 0.0
        %1049 = vmatprep.mubr.f32.mxu0 0.0
        %1050 = vmatmul.mubr.f32.gmra.mrb[0].mxu0 %v983
        %v1051 = vpop.f32.mrb[0].mxu0
        %v1052 = vadd.f32 0.0, %v1051
        %v1053 = vpop.f32.mrb[0].mxu0
        %1054 = vdwg.mxu0
        %v1055 = vsel %vm910, %v759, 0
        %1057 = vmatprep.subr.mxu0 0.0
        %1058 = vmatpush1.msra.mxu0 %v862
        %1059 = vmatprep.subr.mxu0 0.0
        %1060 = vmatpush1.msra.mxu0 0.0
        %1061 = vmatprep.subr.mxu0 0.0
        %1062 = vmatpush1.msra.mxu0 0.0
        %1063 = vmatprep.subr.mxu0 0.0
        %1064 = vmatpush1.msra.mxu0 0.0
        %1065 = vmatprep.subr.mxu0 0.0
        %1066 = vmatpush1.msra.mxu0 0.0
        %1067 = vmatprep.subr.mxu0 0.0
        %1068 = vmatpush1.msra.mxu0 0.0
        %1069 = vmatprep.subr.mxu0 0.0
        %1070 = vmatpush1.msra.mxu0 0.0
        %1071 = vmatprep.subr.mxu0 0.0
        %1072 = vmatpush1.msra.mxu0 0.0
        %1073 = vmatprep.subr.mxu0 0.0
        %1074 = vmatpush1.msra.mxu0 0.0
        %1075 = vmatprep.subr.mxu0 0.0
        %1076 = vmatpush1.msra.mxu0 0.0
        %1077 = vmatprep.subr.mxu0 0.0
        %1078 = vmatpush1.msra.mxu0 0.0
        %1079 = vmatprep.subr.mxu0 0.0
        %1080 = vmatpush1.msra.mxu0 0.0
        %1081 = vmatprep.subr.mxu0 0.0
        %1082 = vmatpush1.msra.mxu0 0.0
        %1083 = vmatprep.subr.mxu0 0.0
        %1084 = vmatpush1.msra.mxu0 0.0
        %1085 = vmatprep.subr.mxu0 0.0
        %1086 = vmatpush1.msra.mxu0 0.0
        %1087 = vmatprep.subr.mxu0 0.0
        %1088 = vmatpush1.msra.mxu0 0.0
        %1089 = vmatprep.subr.mxu0 0.0
        %1090 = vmatpush1.msra.mxu0 0.0
        %1091 = vmatprep.subr.mxu0 0.0
        %1092 = vmatpush1.msra.mxu0 0.0
        %1093 = vmatprep.subr.mxu0 0.0
        %1094 = vmatpush1.msra.mxu0 0.0
        %1095 = vmatprep.subr.mxu0 0.0
        %1096 = vmatpush1.msra.mxu0 0.0
        %1097 = vmatprep.subr.mxu0 0.0
        %1098 = vmatpush1.msra.mxu0 0.0
        %1099 = vmatprep.subr.mxu0 0.0
        %1100 = vmatpush1.msra.mxu0 0.0
        %1101 = vmatprep.subr.mxu0 0.0
        %1102 = vmatpush1.msra.mxu0 0.0
        %1103 = vmatprep.subr.mxu0 0.0
        %1104 = vmatpush1.msra.mxu0 0.0
        %1105 = vmatprep.subr.mxu0 0.0
        %1106 = vmatpush1.msra.mxu0 0.0
        %1107 = vmatprep.subr.mxu0 0.0
        %1108 = vmatpush1.msra.mxu0 0.0
        %1109 = vmatprep.subr.mxu0 0.0
        %1110 = vmatpush1.msra.mxu0 0.0
        %1111 = vmatprep.subr.mxu0 0.0
        %1112 = vmatpush1.msra.mxu0 0.0
        %1113 = vmatprep.subr.mxu0 0.0
        %1114 = vmatpush1.msra.mxu0 0.0
        %1115 = vmatprep.subr.mxu0 0.0
        %1116 = vmatpush1.msra.mxu0 0.0
        %1117 = vmatprep.subr.mxu0 0.0
        %1118 = vmatpush1.msra.mxu0 0.0
        %1119 = vmatprep.subr.mxu0 0.0
        %1120 = vmatpush1.msra.mxu0 0.0
        %1121 = vmatprep.mubr.f32.mxu0 0.0
        %1122 = vmatmul.mubr.f32.gmra.mrb[0].mxu0 %v1055
        %v1123 = vpop.f32.mrb[0].mxu0
        %v1124 = vadd.f32 0.0, %v1123
        %v1125 = vpop.f32.mrb[0].mxu0
        %1126 = vdwg.mxu0
        %v1127 = vsel %vm910, %v761, 0
        %1129 = vmatprep.subr.mxu0 0.0
        %1130 = vmatpush1.msra.mxu0 %v894
        %1131 = vmatprep.subr.mxu0 0.0
        %1132 = vmatpush1.msra.mxu0 0.0
        %1133 = vmatprep.subr.mxu0 0.0
        %1134 = vmatpush1.msra.mxu0 0.0
        %1135 = vmatprep.subr.mxu0 0.0
        %1136 = vmatpush1.msra.mxu0 0.0
        %1137 = vmatprep.subr.mxu0 0.0
        %1138 = vmatpush1.msra.mxu0 0.0
        %1139 = vmatprep.subr.mxu0 0.0
        %1140 = vmatpush1.msra.mxu0 0.0
        %1141 = vmatprep.subr.mxu0 0.0
        %1142 = vmatpush1.msra.mxu0 0.0
        %1143 = vmatprep.subr.mxu0 0.0
        %1144 = vmatpush1.msra.mxu0 0.0
        %1145 = vmatprep.subr.mxu0 0.0
        %1146 = vmatpush1.msra.mxu0 0.0
        %1147 = vmatprep.subr.mxu0 0.0
        %1148 = vmatpush1.msra.mxu0 0.0
        %1149 = vmatprep.subr.mxu0 0.0
        %1150 = vmatpush1.msra.mxu0 0.0
        %1151 = vmatprep.subr.mxu0 0.0
        %1152 = vmatpush1.msra.mxu0 0.0
        %1153 = vmatprep.subr.mxu0 0.0
        %1154 = vmatpush1.msra.mxu0 0.0
        %1155 = vmatprep.subr.mxu0 0.0
        %1156 = vmatpush1.msra.mxu0 0.0
        %1157 = vmatprep.subr.mxu0 0.0
        %1158 = vmatpush1.msra.mxu0 0.0
        %1159 = vmatprep.subr.mxu0 0.0
        %1160 = vmatpush1.msra.mxu0 0.0
        %1161 = vmatprep.subr.mxu0 0.0
        %1162 = vmatpush1.msra.mxu0 0.0
        %1163 = vmatprep.subr.mxu0 0.0
        %1164 = vmatpush1.msra.mxu0 0.0
        %1165 = vmatprep.subr.mxu0 0.0
        %1166 = vmatpush1.msra.mxu0 0.0
        %1167 = vmatprep.subr.mxu0 0.0
        %1168 = vmatpush1.msra.mxu0 0.0
        %1169 = vmatprep.subr.mxu0 0.0
        %1170 = vmatpush1.msra.mxu0 0.0
        %1171 = vmatprep.subr.mxu0 0.0
        %1172 = vmatpush1.msra.mxu0 0.0
        %1173 = vmatprep.subr.mxu0 0.0
        %1174 = vmatpush1.msra.mxu0 0.0
        %1175 = vmatprep.subr.mxu0 0.0
        %1176 = vmatpush1.msra.mxu0 0.0
        %1177 = vmatprep.subr.mxu0 0.0
        %1178 = vmatpush1.msra.mxu0 0.0
        %1179 = vmatprep.subr.mxu0 0.0
        %1180 = vmatpush1.msra.mxu0 0.0
        %1181 = vmatprep.subr.mxu0 0.0
        %1182 = vmatpush1.msra.mxu0 0.0
        %1183 = vmatprep.subr.mxu0 0.0
        %1184 = vmatpush1.msra.mxu0 0.0
        %1185 = vmatprep.subr.mxu0 0.0
        %1186 = vmatpush1.msra.mxu0 0.0
        %1187 = vmatprep.subr.mxu0 0.0
        %1188 = vmatpush1.msra.mxu0 0.0
        %1189 = vmatprep.subr.mxu0 0.0
        %1190 = vmatpush1.msra.mxu0 0.0
        %1191 = vmatprep.subr.mxu0 0.0
        %1192 = vmatpush1.msra.mxu0 0.0
        %1193 = vmatprep.mubr.f32.mxu0 0.0
        %1194 = vmatmul.mubr.f32.gmra.mrb[0].mxu0 %v1127
        %v1195 = vpop.f32.mrb[0].mxu0
        %v1196 = vadd.f32 0.0, %v1195
        %v1197 = vpop.f32.mrb[0].mxu0
        %1198 = vdwg.mxu0
        %v1199 = vld [vmem:[#allocation16] sm:$0x3]
        %v1200 = vunpack.c.0.s8 %v1199
        %vm1201 = vcmp.ne.s32.totalorder %v1200, 0
        %v1202 = vsel %vm1201, 1, 0
        %vm1203 = vcmp.eq.s32.totalorder %v1202, 1
        %v1204 = vsel %vm1203, %v980, -10000.0
        %v1205 = vsel %vm1203, %v1052, -10000.0
        %v1206 = vsel %vm1203, %v1124, -10000.0
        %v1207 = vsel %vm1203, %v1196, -10000.0
        %v1208 = vsel %vm910, %v1204, -inf
        %1209 = vmax.xlane.f32.xlu0 %v1208
        %v1210 = vpop.xlane.xlu0 %1209
        %v1211 = vsel %vm910, %v1205, -inf
        %1212 = vmax.xlane.f32.xlu0 %v1211
        %v1213 = vpop.xlane.xlu0 %1212
        %v1214 = vsel %vm910, %v1206, -inf
        %1215 = vmax.xlane.f32.xlu0 %v1214
        %v1216 = vpop.xlane.xlu0 %1215
        %v1217 = vsel %vm910, %v1207, -inf
        %1218 = vmax.xlane.f32.xlu0 %v1217
        %v1219 = vpop.xlane.xlu0 %1218
        %v1220 = vsub.f32 %v1204, %v1210
        %v1221 = vsub.f32 %v1205, %v1213
        %v1222 = vsub.f32 %v1206, %v1216
        %v1223 = vsub.f32 %v1207, %v1219
        %v1224 = vmul.f32 %v1220, 1.442695
        %v1225 = vpow.pop %v1224
        %v1226 = vmul.f32 %v1221, 1.442695
        %v1227 = vpow.pop %v1226
        %v1228 = vmul.f32 %v1222, 1.442695
        %v1229 = vpow.pop %v1228
        %v1230 = vmul.f32 %v1223, 1.442695
        %v1231 = vpow.pop %v1230
        %v1232 = vsel %vm910, %v1225, 0.0
        %1233 = vadd.xlane.f32.xlu0 %v1232
        %v1234 = vpop.xlane.xlu0 %1233
        %v1235 = vsel %vm910, %v1227, 0.0
        %1236 = vadd.xlane.f32.xlu0 %v1235
        %v1237 = vpop.xlane.xlu0 %1236
        %v1238 = vsel %vm910, %v1229, 0.0
        %1239 = vadd.xlane.f32.xlu0 %v1238
        %v1240 = vpop.xlane.xlu0 %1239
        %v1241 = vsel %vm910, %v1231, 0.0
        %1242 = vadd.xlane.f32.xlu0 %v1241
        %v1243 = vpop.xlane.xlu0 %1242
        %v1244 = vrcp.pop %v1234
        %v1245 = vrcp.pop %v1237
        %v1246 = vrcp.pop %v1240
        %v1247 = vrcp.pop %v1243
        %v1248 = vmul.f32 %v1225, %v1244
        %v1249 = vmul.f32 %v1227, %v1245
        %v1250 = vmul.f32 %v1229, %v1246
        %v1251 = vmul.f32 %v1231, %v1247
        %1252 = vxpose.xlu0.b32.start [1/16] %v752, 128
        %1253 = vxpose.xlu0.b32.cont [2/16] 0.0, 128
        %1254 = vxpose.xlu0.b32.cont [3/16] 0.0, 128
        %1255 = vxpose.xlu0.b32.cont [4/16] 0.0, 128
        %1256 = vxpose.xlu0.b32.cont [5/16] 0.0, 128
        %1257 = vxpose.xlu0.b32.cont [6/16] 0.0, 128
        %1258 = vxpose.xlu0.b32.cont [7/16] 0.0, 128
        %1259 = vxpose.xlu0.b32.cont [8/16] 0.0, 128
        %1260 = vxpose.xlu0.b32.cont [9/16] 0.0, 128
        %1261 = vxpose.xlu0.b32.cont [10/16] 0.0, 128
        %1262 = vxpose.xlu0.b32.cont [11/16] 0.0, 128
        %1263 = vxpose.xlu0.b32.cont [12/16] 0.0, 128
        %1264 = vxpose.xlu0.b32.cont [13/16] 0.0, 128
        %1265 = vxpose.xlu0.b32.cont [14/16] 0.0, 128
        %1266 = vxpose.xlu0.b32.cont [15/16] 0.0, 128
        %1267 = vxpose.xlu0.b32.end [16/16] 0.0, 128
        %v1268 = vpop.trf.xlu0
        %v1269 = vpop.trf.xlu0
        %v1270 = vpop.trf.xlu0
        %v1271 = vpop.trf.xlu0
        %v1272 = vpop.trf.xlu0
        %v1273 = vpop.trf.xlu0
        %v1274 = vpop.trf.xlu0
        %v1275 = vpop.trf.xlu0
        %v1276 = vpop.trf.xlu0
        %v1277 = vpop.trf.xlu0
        %v1278 = vpop.trf.xlu0
        %v1279 = vpop.trf.xlu0
        %v1280 = vpop.trf.xlu0
        %v1281 = vpop.trf.xlu0
        %v1282 = vpop.trf.xlu0
        %v1283 = vpop.trf.xlu0
        %1284 = vxpose.xlu0.b32.start [1/16] %v774, 128
        %1285 = vxpose.xlu0.b32.cont [2/16] 0.0, 128
        %1286 = vxpose.xlu0.b32.cont [3/16] 0.0, 128
        %1287 = vxpose.xlu0.b32.cont [4/16] 0.0, 128
        %1288 = vxpose.xlu0.b32.cont [5/16] 0.0, 128
        %1289 = vxpose.xlu0.b32.cont [6/16] 0.0, 128
        %1290 = vxpose.xlu0.b32.cont [7/16] 0.0, 128
        %1291 = vxpose.xlu0.b32.cont [8/16] 0.0, 128
        %1292 = vxpose.xlu0.b32.cont [9/16] 0.0, 128
        %1293 = vxpose.xlu0.b32.cont [10/16] 0.0, 128
        %1294 = vxpose.xlu0.b32.cont [11/16] 0.0, 128
        %1295 = vxpose.xlu0.b32.cont [12/16] 0.0, 128
        %1296 = vxpose.xlu0.b32.cont [13/16] 0.0, 128
        %1297 = vxpose.xlu0.b32.cont [14/16] 0.0, 128
        %1298 = vxpose.xlu0.b32.cont [15/16] 0.0, 128
        %1299 = vxpose.xlu0.b32.end [16/16] 0.0, 128
        %v1300 = vpop.trf.xlu0
        %v1301 = vpop.trf.xlu0
        %v1302 = vpop.trf.xlu0
        %v1303 = vpop.trf.xlu0
        %v1304 = vpop.trf.xlu0
        %v1305 = vpop.trf.xlu0
        %v1306 = vpop.trf.xlu0
        %v1307 = vpop.trf.xlu0
        %v1308 = vpop.trf.xlu0
        %v1309 = vpop.trf.xlu0
        %v1310 = vpop.trf.xlu0
        %v1311 = vpop.trf.xlu0
        %v1312 = vpop.trf.xlu0
        %v1313 = vpop.trf.xlu0
        %v1314 = vpop.trf.xlu0
        %v1315 = vpop.trf.xlu0
        %1316 = vxpose.xlu0.b32.start [1/16] %v777, 128
        %1317 = vxpose.xlu0.b32.cont [2/16] 0.0, 128
        %1318 = vxpose.xlu0.b32.cont [3/16] 0.0, 128
        %1319 = vxpose.xlu0.b32.cont [4/16] 0.0, 128
        %1320 = vxpose.xlu0.b32.cont [5/16] 0.0, 128
        %1321 = vxpose.xlu0.b32.cont [6/16] 0.0, 128
        %1322 = vxpose.xlu0.b32.cont [7/16] 0.0, 128
        %1323 = vxpose.xlu0.b32.cont [8/16] 0.0, 128
        %1324 = vxpose.xlu0.b32.cont [9/16] 0.0, 128
        %1325 = vxpose.xlu0.b32.cont [10/16] 0.0, 128
        %1326 = vxpose.xlu0.b32.cont [11/16] 0.0, 128
        %1327 = vxpose.xlu0.b32.cont [12/16] 0.0, 128
        %1328 = vxpose.xlu0.b32.cont [13/16] 0.0, 128
        %1329 = vxpose.xlu0.b32.cont [14/16] 0.0, 128
        %1330 = vxpose.xlu0.b32.cont [15/16] 0.0, 128
        %1331 = vxpose.xlu0.b32.end [16/16] 0.0, 128
        %v1332 = vpop.trf.xlu0
        %v1333 = vpop.trf.xlu0
        %v1334 = vpop.trf.xlu0
        %v1335 = vpop.trf.xlu0
        %v1336 = vpop.trf.xlu0
        %v1337 = vpop.trf.xlu0
        %v1338 = vpop.trf.xlu0
        %v1339 = vpop.trf.xlu0
        %v1340 = vpop.trf.xlu0
        %v1341 = vpop.trf.xlu0
        %v1342 = vpop.trf.xlu0
        %v1343 = vpop.trf.xlu0
        %v1344 = vpop.trf.xlu0
        %v1345 = vpop.trf.xlu0
        %v1346 = vpop.trf.xlu0
        %v1347 = vpop.trf.xlu0
        %1348 = vxpose.xlu0.b32.start [1/16] %v780, 128
        %1349 = vxpose.xlu0.b32.cont [2/16] 0.0, 128
        %1350 = vxpose.xlu0.b32.cont [3/16] 0.0, 128
        %1351 = vxpose.xlu0.b32.cont [4/16] 0.0, 128
        %1352 = vxpose.xlu0.b32.cont [5/16] 0.0, 128
        %1353 = vxpose.xlu0.b32.cont [6/16] 0.0, 128
        %1354 = vxpose.xlu0.b32.cont [7/16] 0.0, 128
        %1355 = vxpose.xlu0.b32.cont [8/16] 0.0, 128
        %1356 = vxpose.xlu0.b32.cont [9/16] 0.0, 128
        %1357 = vxpose.xlu0.b32.cont [10/16] 0.0, 128
        %1358 = vxpose.xlu0.b32.cont [11/16] 0.0, 128
        %1359 = vxpose.xlu0.b32.cont [12/16] 0.0, 128
        %1360 = vxpose.xlu0.b32.cont [13/16] 0.0, 128
        %1361 = vxpose.xlu0.b32.cont [14/16] 0.0, 128
        %1362 = vxpose.xlu0.b32.cont [15/16] 0.0, 128
        %1363 = vxpose.xlu0.b32.end [16/16] 0.0, 128
        %v1364 = vpop.trf.xlu0
        %v1365 = vpop.trf.xlu0
        %v1366 = vpop.trf.xlu0
        %v1367 = vpop.trf.xlu0
        %v1368 = vpop.trf.xlu0
        %v1369 = vpop.trf.xlu0
        %v1370 = vpop.trf.xlu0
        %v1371 = vpop.trf.xlu0
        %v1372 = vpop.trf.xlu0
        %v1373 = vpop.trf.xlu0
        %v1374 = vpop.trf.xlu0
        %v1375 = vpop.trf.xlu0
        %v1376 = vpop.trf.xlu0
        %v1377 = vpop.trf.xlu0
        %v1378 = vpop.trf.xlu0
        %v1379 = vpop.trf.xlu0
        %v1381 = vsel %vm910, %v1268, 0
        %v1384 = vsel %vm910, %v1248, 0
        %1386 = vmatprep.subr.mxu0 0.0
        %1387 = vmatpush1.xpose.msra.mxu0 %v1384
        %1388 = vmatprep.subr.mxu0 0.0
        %1389 = vmatpush1.xpose.msra.mxu0 0.0
        %1390 = vmatprep.subr.mxu0 0.0
        %1391 = vmatpush1.xpose.msra.mxu0 0.0
        %1392 = vmatprep.subr.mxu0 0.0
        %1393 = vmatpush1.xpose.msra.mxu0 0.0
        %1394 = vmatprep.subr.mxu0 0.0
        %1395 = vmatpush1.xpose.msra.mxu0 0.0
        %1396 = vmatprep.subr.mxu0 0.0
        %1397 = vmatpush1.xpose.msra.mxu0 0.0
        %1398 = vmatprep.subr.mxu0 0.0
        %1399 = vmatpush1.xpose.msra.mxu0 0.0
        %1400 = vmatprep.subr.mxu0 0.0
        %1401 = vmatpush1.xpose.msra.mxu0 0.0
        %1402 = vmatprep.subr.mxu0 0.0
        %1403 = vmatpush1.xpose.msra.mxu0 0.0
        %1404 = vmatprep.subr.mxu0 0.0
        %1405 = vmatpush1.xpose.msra.mxu0 0.0
        %1406 = vmatprep.subr.mxu0 0.0
        %1407 = vmatpush1.xpose.msra.mxu0 0.0
        %1408 = vmatprep.subr.mxu0 0.0
        %1409 = vmatpush1.xpose.msra.mxu0 0.0
        %1410 = vmatprep.subr.mxu0 0.0
        %1411 = vmatpush1.xpose.msra.mxu0 0.0
        %1412 = vmatprep.subr.mxu0 0.0
        %1413 = vmatpush1.xpose.msra.mxu0 0.0
        %1414 = vmatprep.subr.mxu0 0.0
        %1415 = vmatpush1.xpose.msra.mxu0 0.0
        %1416 = vmatprep.subr.mxu0 0.0
        %1417 = vmatpush1.xpose.msra.mxu0 0.0
        %1418 = vmatprep.subr.mxu0 0.0
        %1419 = vmatpush1.xpose.msra.mxu0 0.0
        %1420 = vmatprep.subr.mxu0 0.0
        %1421 = vmatpush1.xpose.msra.mxu0 0.0
        %1422 = vmatprep.subr.mxu0 0.0
        %1423 = vmatpush1.xpose.msra.mxu0 0.0
        %1424 = vmatprep.subr.mxu0 0.0
        %1425 = vmatpush1.xpose.msra.mxu0 0.0
        %1426 = vmatprep.subr.mxu0 0.0
        %1427 = vmatpush1.xpose.msra.mxu0 0.0
        %1428 = vmatprep.subr.mxu0 0.0
        %1429 = vmatpush1.xpose.msra.mxu0 0.0
        %1430 = vmatprep.subr.mxu0 0.0
        %1431 = vmatpush1.xpose.msra.mxu0 0.0
        %1432 = vmatprep.subr.mxu0 0.0
        %1433 = vmatpush1.xpose.msra.mxu0 0.0
        %1434 = vmatprep.subr.mxu0 0.0
        %1435 = vmatpush1.xpose.msra.mxu0 0.0
        %1436 = vmatprep.subr.mxu0 0.0
        %1437 = vmatpush1.xpose.msra.mxu0 0.0
        %1438 = vmatprep.subr.mxu0 0.0
        %1439 = vmatpush1.xpose.msra.mxu0 0.0
        %1440 = vmatprep.subr.mxu0 0.0
        %1441 = vmatpush1.xpose.msra.mxu0 0.0
        %1442 = vmatprep.subr.mxu0 0.0
        %1443 = vmatpush1.xpose.msra.mxu0 0.0
        %1444 = vmatprep.subr.mxu0 0.0
        %1445 = vmatpush1.xpose.msra.mxu0 0.0
        %1446 = vmatprep.subr.mxu0 0.0
        %1447 = vmatpush1.xpose.msra.mxu0 0.0
        %1448 = vmatprep.subr.mxu0 0.0
        %1449 = vmatpush1.xpose.msra.mxu0 0.0
        %1450 = vmatprep.mubr.f32.mxu0 0.0
        %1451 = vmatmul.mubr.f32.gmra.mrb[0].mxu0 %v1381
        %v1452 = vpop.f32.mrb[0].mxu0
        %v1453 = vadd.f32 0.0, %v1452
        %v1454 = vpop.f32.mrb[0].mxu0
        %1455 = vdwg.mxu0
        %v1457 = vsel %vm910, %v1300, 0
        %v1460 = vsel %vm910, %v1249, 0
        %1462 = vmatprep.subr.mxu0 0.0
        %1463 = vmatpush1.xpose.msra.mxu0 %v1460
        %1464 = vmatprep.subr.mxu0 0.0
        %1465 = vmatpush1.xpose.msra.mxu0 0.0
        %1466 = vmatprep.subr.mxu0 0.0
        %1467 = vmatpush1.xpose.msra.mxu0 0.0
        %1468 = vmatprep.subr.mxu0 0.0
        %1469 = vmatpush1.xpose.msra.mxu0 0.0
        %1470 = vmatprep.subr.mxu0 0.0
        %1471 = vmatpush1.xpose.msra.mxu0 0.0
        %1472 = vmatprep.subr.mxu0 0.0
        %1473 = vmatpush1.xpose.msra.mxu0 0.0
        %1474 = vmatprep.subr.mxu0 0.0
        %1475 = vmatpush1.xpose.msra.mxu0 0.0
        %1476 = vmatprep.subr.mxu0 0.0
        %1477 = vmatpush1.xpose.msra.mxu0 0.0
        %1478 = vmatprep.subr.mxu0 0.0
        %1479 = vmatpush1.xpose.msra.mxu0 0.0
        %1480 = vmatprep.subr.mxu0 0.0
        %1481 = vmatpush1.xpose.msra.mxu0 0.0
        %1482 = vmatprep.subr.mxu0 0.0
        %1483 = vmatpush1.xpose.msra.mxu0 0.0
        %1484 = vmatprep.subr.mxu0 0.0
        %1485 = vmatpush1.xpose.msra.mxu0 0.0
        %1486 = vmatprep.subr.mxu0 0.0
        %1487 = vmatpush1.xpose.msra.mxu0 0.0
        %1488 = vmatprep.subr.mxu0 0.0
        %1489 = vmatpush1.xpose.msra.mxu0 0.0
        %1490 = vmatprep.subr.mxu0 0.0
        %1491 = vmatpush1.xpose.msra.mxu0 0.0
        %1492 = vmatprep.subr.mxu0 0.0
        %1493 = vmatpush1.xpose.msra.mxu0 0.0
        %1494 = vmatprep.subr.mxu0 0.0
        %1495 = vmatpush1.xpose.msra.mxu0 0.0
        %1496 = vmatprep.subr.mxu0 0.0
        %1497 = vmatpush1.xpose.msra.mxu0 0.0
        %1498 = vmatprep.subr.mxu0 0.0
        %1499 = vmatpush1.xpose.msra.mxu0 0.0
        %1500 = vmatprep.subr.mxu0 0.0
        %1501 = vmatpush1.xpose.msra.mxu0 0.0
        %1502 = vmatprep.subr.mxu0 0.0
        %1503 = vmatpush1.xpose.msra.mxu0 0.0
        %1504 = vmatprep.subr.mxu0 0.0
        %1505 = vmatpush1.xpose.msra.mxu0 0.0
        %1506 = vmatprep.subr.mxu0 0.0
        %1507 = vmatpush1.xpose.msra.mxu0 0.0
        %1508 = vmatprep.subr.mxu0 0.0
        %1509 = vmatpush1.xpose.msra.mxu0 0.0
        %1510 = vmatprep.subr.mxu0 0.0
        %1511 = vmatpush1.xpose.msra.mxu0 0.0
        %1512 = vmatprep.subr.mxu0 0.0
        %1513 = vmatpush1.xpose.msra.mxu0 0.0
        %1514 = vmatprep.subr.mxu0 0.0
        %1515 = vmatpush1.xpose.msra.mxu0 0.0
        %1516 = vmatprep.subr.mxu0 0.0
        %1517 = vmatpush1.xpose.msra.mxu0 0.0
        %1518 = vmatprep.subr.mxu0 0.0
        %1519 = vmatpush1.xpose.msra.mxu0 0.0
        %1520 = vmatprep.subr.mxu0 0.0
        %1521 = vmatpush1.xpose.msra.mxu0 0.0
        %1522 = vmatprep.subr.mxu0 0.0
        %1523 = vmatpush1.xpose.msra.mxu0 0.0
        %1524 = vmatprep.subr.mxu0 0.0
        %1525 = vmatpush1.xpose.msra.mxu0 0.0
        %1526 = vmatprep.mubr.f32.mxu0 0.0
        %1527 = vmatmul.mubr.f32.gmra.mrb[0].mxu0 %v1457
        %v1528 = vpop.f32.mrb[0].mxu0
        %v1529 = vadd.f32 0.0, %v1528
        %v1530 = vpop.f32.mrb[0].mxu0
        %1531 = vdwg.mxu0
        %v1533 = vsel %vm910, %v1332, 0
        %v1536 = vsel %vm910, %v1250, 0
        %1538 = vmatprep.subr.mxu0 0.0
        %1539 = vmatpush1.xpose.msra.mxu0 %v1536
        %1540 = vmatprep.subr.mxu0 0.0
        %1541 = vmatpush1.xpose.msra.mxu0 0.0
        %1542 = vmatprep.subr.mxu0 0.0
        %1543 = vmatpush1.xpose.msra.mxu0 0.0
        %1544 = vmatprep.subr.mxu0 0.0
        %1545 = vmatpush1.xpose.msra.mxu0 0.0
        %1546 = vmatprep.subr.mxu0 0.0
        %1547 = vmatpush1.xpose.msra.mxu0 0.0
        %1548 = vmatprep.subr.mxu0 0.0
        %1549 = vmatpush1.xpose.msra.mxu0 0.0
        %1550 = vmatprep.subr.mxu0 0.0
        %1551 = vmatpush1.xpose.msra.mxu0 0.0
        %1552 = vmatprep.subr.mxu0 0.0
        %1553 = vmatpush1.xpose.msra.mxu0 0.0
        %1554 = vmatprep.subr.mxu0 0.0
        %1555 = vmatpush1.xpose.msra.mxu0 0.0
        %1556 = vmatprep.subr.mxu0 0.0
        %1557 = vmatpush1.xpose.msra.mxu0 0.0
        %1558 = vmatprep.subr.mxu0 0.0
        %1559 = vmatpush1.xpose.msra.mxu0 0.0
        %1560 = vmatprep.subr.mxu0 0.0
        %1561 = vmatpush1.xpose.msra.mxu0 0.0
        %1562 = vmatprep.subr.mxu0 0.0
        %1563 = vmatpush1.xpose.msra.mxu0 0.0
        %1564 = vmatprep.subr.mxu0 0.0
        %1565 = vmatpush1.xpose.msra.mxu0 0.0
        %1566 = vmatprep.subr.mxu0 0.0
        %1567 = vmatpush1.xpose.msra.mxu0 0.0
        %1568 = vmatprep.subr.mxu0 0.0
        %1569 = vmatpush1.xpose.msra.mxu0 0.0
        %1570 = vmatprep.subr.mxu0 0.0
        %1571 = vmatpush1.xpose.msra.mxu0 0.0
        %1572 = vmatprep.subr.mxu0 0.0
        %1573 = vmatpush1.xpose.msra.mxu0 0.0
        %1574 = vmatprep.subr.mxu0 0.0
        %1575 = vmatpush1.xpose.msra.mxu0 0.0
        %1576 = vmatprep.subr.mxu0 0.0
        %1577 = vmatpush1.xpose.msra.mxu0 0.0
        %1578 = vmatprep.subr.mxu0 0.0
        %1579 = vmatpush1.xpose.msra.mxu0 0.0
        %1580 = vmatprep.subr.mxu0 0.0
        %1581 = vmatpush1.xpose.msra.mxu0 0.0
        %1582 = vmatprep.subr.mxu0 0.0
        %1583 = vmatpush1.xpose.msra.mxu0 0.0
        %1584 = vmatprep.subr.mxu0 0.0
        %1585 = vmatpush1.xpose.msra.mxu0 0.0
        %1586 = vmatprep.subr.mxu0 0.0
        %1587 = vmatpush1.xpose.msra.mxu0 0.0
        %1588 = vmatprep.subr.mxu0 0.0
        %1589 = vmatpush1.xpose.msra.mxu0 0.0
        %1590 = vmatprep.subr.mxu0 0.0
        %1591 = vmatpush1.xpose.msra.mxu0 0.0
        %1592 = vmatprep.subr.mxu0 0.0
        %1593 = vmatpush1.xpose.msra.mxu0 0.0
        %1594 = vmatprep.subr.mxu0 0.0
        %1595 = vmatpush1.xpose.msra.mxu0 0.0
        %1596 = vmatprep.subr.mxu0 0.0
        %1597 = vmatpush1.xpose.msra.mxu0 0.0
        %1598 = vmatprep.subr.mxu0 0.0
        %1599 = vmatpush1.xpose.msra.mxu0 0.0
        %1600 = vmatprep.subr.mxu0 0.0
        %1601 = vmatpush1.xpose.msra.mxu0 0.0
        %1602 = vmatprep.mubr.f32.mxu0 0.0
        %1603 = vmatmul.mubr.f32.gmra.mrb[0].mxu0 %v1533
        %v1604 = vpop.f32.mrb[0].mxu0
        %v1605 = vadd.f32 0.0, %v1604
        %v1606 = vpop.f32.mrb[0].mxu0
        %1607 = vdwg.mxu0
        %v1609 = vsel %vm910, %v1364, 0
        %v1612 = vsel %vm910, %v1251, 0
        %1614 = vmatprep.subr.mxu0 0.0
        %1615 = vmatpush1.xpose.msra.mxu0 %v1612
        %1616 = vmatprep.subr.mxu0 0.0
        %1617 = vmatpush1.xpose.msra.mxu0 0.0
        %1618 = vmatprep.subr.mxu0 0.0
        %1619 = vmatpush1.xpose.msra.mxu0 0.0
        %1620 = vmatprep.subr.mxu0 0.0
        %1621 = vmatpush1.xpose.msra.mxu0 0.0
        %1622 = vmatprep.subr.mxu0 0.0
        %1623 = vmatpush1.xpose.msra.mxu0 0.0
        %1624 = vmatprep.subr.mxu0 0.0
        %1625 = vmatpush1.xpose.msra.mxu0 0.0
        %1626 = vmatprep.subr.mxu0 0.0
        %1627 = vmatpush1.xpose.msra.mxu0 0.0
        %1628 = vmatprep.subr.mxu0 0.0
        %1629 = vmatpush1.xpose.msra.mxu0 0.0
        %1630 = vmatprep.subr.mxu0 0.0
        %1631 = vmatpush1.xpose.msra.mxu0 0.0
        %1632 = vmatprep.subr.mxu0 0.0
        %1633 = vmatpush1.xpose.msra.mxu0 0.0
        %1634 = vmatprep.subr.mxu0 0.0
        %1635 = vmatpush1.xpose.msra.mxu0 0.0
        %1636 = vmatprep.subr.mxu0 0.0
        %1637 = vmatpush1.xpose.msra.mxu0 0.0
        %1638 = vmatprep.subr.mxu0 0.0
        %1639 = vmatpush1.xpose.msra.mxu0 0.0
        %1640 = vmatprep.subr.mxu0 0.0
        %1641 = vmatpush1.xpose.msra.mxu0 0.0
        %1642 = vmatprep.subr.mxu0 0.0
        %1643 = vmatpush1.xpose.msra.mxu0 0.0
        %1644 = vmatprep.subr.mxu0 0.0
        %1645 = vmatpush1.xpose.msra.mxu0 0.0
        %1646 = vmatprep.subr.mxu0 0.0
        %1647 = vmatpush1.xpose.msra.mxu0 0.0
        %1648 = vmatprep.subr.mxu0 0.0
        %1649 = vmatpush1.xpose.msra.mxu0 0.0
        %1650 = vmatprep.subr.mxu0 0.0
        %1651 = vmatpush1.xpose.msra.mxu0 0.0
        %1652 = vmatprep.subr.mxu0 0.0
        %1653 = vmatpush1.xpose.msra.mxu0 0.0
        %1654 = vmatprep.subr.mxu0 0.0
        %1655 = vmatpush1.xpose.msra.mxu0 0.0
        %1656 = vmatprep.subr.mxu0 0.0
        %1657 = vmatpush1.xpose.msra.mxu0 0.0
        %1658 = vmatprep.subr.mxu0 0.0
        %1659 = vmatpush1.xpose.msra.mxu0 0.0
        %1660 = vmatprep.subr.mxu0 0.0
        %1661 = vmatpush1.xpose.msra.mxu0 0.0
        %1662 = vmatprep.subr.mxu0 0.0
        %1663 = vmatpush1.xpose.msra.mxu0 0.0
        %1664 = vmatprep.subr.mxu0 0.0
        %1665 = vmatpush1.xpose.msra.mxu0 0.0
        %1666 = vmatprep.subr.mxu0 0.0
        %1667 = vmatpush1.xpose.msra.mxu0 0.0
        %1668 = vmatprep.subr.mxu0 0.0
        %1669 = vmatpush1.xpose.msra.mxu0 0.0
        %1670 = vmatprep.subr.mxu0 0.0
        %1671 = vmatpush1.xpose.msra.mxu0 0.0
        %1672 = vmatprep.subr.mxu0 0.0
        %1673 = vmatpush1.xpose.msra.mxu0 0.0
        %1674 = vmatprep.subr.mxu0 0.0
        %1675 = vmatpush1.xpose.msra.mxu0 0.0
        %1676 = vmatprep.subr.mxu0 0.0
        %1677 = vmatpush1.xpose.msra.mxu0 0.0
        %1678 = vmatprep.mubr.f32.mxu0 0.0
        %1679 = vmatmul.mubr.f32.gmra.mrb[0].mxu0 %v1609
        %v1680 = vpop.f32.mrb[0].mxu0
        %v1681 = vadd.f32 0.0, %v1680
        %v1682 = vpop.f32.mrb[0].mxu0
        %1683 = vdwg.mxu0
        %1684 = vxpose.xlu0.b32.start [1/16] %v1453, 128
        %1685 = vxpose.xlu0.b32.cont [2/16] 0.0, 128
        %1686 = vxpose.xlu0.b32.cont [3/16] 0.0, 128
        %1687 = vxpose.xlu0.b32.cont [4/16] 0.0, 128
        %1688 = vxpose.xlu0.b32.cont [5/16] 0.0, 128
        %1689 = vxpose.xlu0.b32.cont [6/16] 0.0, 128
        %1690 = vxpose.xlu0.b32.cont [7/16] 0.0, 128
        %1691 = vxpose.xlu0.b32.cont [8/16] 0.0, 128
        %1692 = vxpose.xlu0.b32.cont [9/16] 0.0, 128
        %1693 = vxpose.xlu0.b32.cont [10/16] 0.0, 128
        %1694 = vxpose.xlu0.b32.cont [11/16] 0.0, 128
        %1695 = vxpose.xlu0.b32.cont [12/16] 0.0, 128
        %1696 = vxpose.xlu0.b32.cont [13/16] 0.0, 128
        %1697 = vxpose.xlu0.b32.cont [14/16] 0.0, 128
        %1698 = vxpose.xlu0.b32.cont [15/16] 0.0, 128
        %1699 = vxpose.xlu0.b32.end [16/16] 0.0, 128
        %v1700 = vpop.trf.xlu0
        %v1701 = vpop.trf.xlu0
        %v1702 = vpop.trf.xlu0
        %v1703 = vpop.trf.xlu0
        %v1704 = vpop.trf.xlu0
        %v1705 = vpop.trf.xlu0
        %v1706 = vpop.trf.xlu0
        %v1707 = vpop.trf.xlu0
        %v1708 = vpop.trf.xlu0
        %v1709 = vpop.trf.xlu0
        %v1710 = vpop.trf.xlu0
        %v1711 = vpop.trf.xlu0
        %v1712 = vpop.trf.xlu0
        %v1713 = vpop.trf.xlu0
        %v1714 = vpop.trf.xlu0
        %v1715 = vpop.trf.xlu0
        %1716 = vxpose.xlu0.b32.start [1/16] %v1529, 128
        %1717 = vxpose.xlu0.b32.cont [2/16] 0.0, 128
        %1718 = vxpose.xlu0.b32.cont [3/16] 0.0, 128
        %1719 = vxpose.xlu0.b32.cont [4/16] 0.0, 128
        %1720 = vxpose.xlu0.b32.cont [5/16] 0.0, 128
        %1721 = vxpose.xlu0.b32.cont [6/16] 0.0, 128
        %1722 = vxpose.xlu0.b32.cont [7/16] 0.0, 128
        %1723 = vxpose.xlu0.b32.cont [8/16] 0.0, 128
        %1724 = vxpose.xlu0.b32.cont [9/16] 0.0, 128
        %1725 = vxpose.xlu0.b32.cont [10/16] 0.0, 128
        %1726 = vxpose.xlu0.b32.cont [11/16] 0.0, 128
        %1727 = vxpose.xlu0.b32.cont [12/16] 0.0, 128
        %1728 = vxpose.xlu0.b32.cont [13/16] 0.0, 128
        %1729 = vxpose.xlu0.b32.cont [14/16] 0.0, 128
        %1730 = vxpose.xlu0.b32.cont [15/16] 0.0, 128
        %1731 = vxpose.xlu0.b32.end [16/16] 0.0, 128
        %v1732 = vpop.trf.xlu0
        %v1733 = vpop.trf.xlu0
        %v1734 = vpop.trf.xlu0
        %v1735 = vpop.trf.xlu0
        %v1736 = vpop.trf.xlu0
        %v1737 = vpop.trf.xlu0
        %v1738 = vpop.trf.xlu0
        %v1739 = vpop.trf.xlu0
        %v1740 = vpop.trf.xlu0
        %v1741 = vpop.trf.xlu0
        %v1742 = vpop.trf.xlu0
        %v1743 = vpop.trf.xlu0
        %v1744 = vpop.trf.xlu0
        %v1745 = vpop.trf.xlu0
        %v1746 = vpop.trf.xlu0
        %v1747 = vpop.trf.xlu0
        %1748 = vxpose.xlu0.b32.start [1/16] %v1605, 128
        %1749 = vxpose.xlu0.b32.cont [2/16] 0.0, 128
        %1750 = vxpose.xlu0.b32.cont [3/16] 0.0, 128
        %1751 = vxpose.xlu0.b32.cont [4/16] 0.0, 128
        %1752 = vxpose.xlu0.b32.cont [5/16] 0.0, 128
        %1753 = vxpose.xlu0.b32.cont [6/16] 0.0, 128
        %1754 = vxpose.xlu0.b32.cont [7/16] 0.0, 128
        %1755 = vxpose.xlu0.b32.cont [8/16] 0.0, 128
        %1756 = vxpose.xlu0.b32.cont [9/16] 0.0, 128
        %1757 = vxpose.xlu0.b32.cont [10/16] 0.0, 128
        %1758 = vxpose.xlu0.b32.cont [11/16] 0.0, 128
        %1759 = vxpose.xlu0.b32.cont [12/16] 0.0, 128
        %1760 = vxpose.xlu0.b32.cont [13/16] 0.0, 128
        %1761 = vxpose.xlu0.b32.cont [14/16] 0.0, 128
        %1762 = vxpose.xlu0.b32.cont [15/16] 0.0, 128
        %1763 = vxpose.xlu0.b32.end [16/16] 0.0, 128
        %v1764 = vpop.trf.xlu0
        %v1765 = vpop.trf.xlu0
        %v1766 = vpop.trf.xlu0
        %v1767 = vpop.trf.xlu0
        %v1768 = vpop.trf.xlu0
        %v1769 = vpop.trf.xlu0
        %v1770 = vpop.trf.xlu0
        %v1771 = vpop.trf.xlu0
        %v1772 = vpop.trf.xlu0
        %v1773 = vpop.trf.xlu0
        %v1774 = vpop.trf.xlu0
        %v1775 = vpop.trf.xlu0
        %v1776 = vpop.trf.xlu0
        %v1777 = vpop.trf.xlu0
        %v1778 = vpop.trf.xlu0
        %v1779 = vpop.trf.xlu0
        %1780 = vxpose.xlu0.b32.start [1/16] %v1681, 128
        %1781 = vxpose.xlu0.b32.cont [2/16] 0.0, 128
        %1782 = vxpose.xlu0.b32.cont [3/16] 0.0, 128
        %1783 = vxpose.xlu0.b32.cont [4/16] 0.0, 128
        %1784 = vxpose.xlu0.b32.cont [5/16] 0.0, 128
        %1785 = vxpose.xlu0.b32.cont [6/16] 0.0, 128
        %1786 = vxpose.xlu0.b32.cont [7/16] 0.0, 128
        %1787 = vxpose.xlu0.b32.cont [8/16] 0.0, 128
        %1788 = vxpose.xlu0.b32.cont [9/16] 0.0, 128
        %1789 = vxpose.xlu0.b32.cont [10/16] 0.0, 128
        %1790 = vxpose.xlu0.b32.cont [11/16] 0.0, 128
        %1791 = vxpose.xlu0.b32.cont [12/16] 0.0, 128
        %1792 = vxpose.xlu0.b32.cont [13/16] 0.0, 128
        %1793 = vxpose.xlu0.b32.cont [14/16] 0.0, 128
        %1794 = vxpose.xlu0.b32.cont [15/16] 0.0, 128
        %1795 = vxpose.xlu0.b32.end [16/16] 0.0, 128
        %v1796 = vpop.trf.xlu0
        %v1797 = vpop.trf.xlu0
        %v1798 = vpop.trf.xlu0
        %v1799 = vpop.trf.xlu0
        %v1800 = vpop.trf.xlu0
        %v1801 = vpop.trf.xlu0
        %v1802 = vpop.trf.xlu0
        %v1803 = vpop.trf.xlu0
        %v1804 = vpop.trf.xlu0
        %v1805 = vpop.trf.xlu0
        %v1806 = vpop.trf.xlu0
        %v1807 = vpop.trf.xlu0
        %v1808 = vpop.trf.xlu0
        %v1809 = vpop.trf.xlu0
        %v1810 = vpop.trf.xlu0
        %v1811 = vpop.trf.xlu0
        %v1812 = vcombine.low %v1700, %v1764
        %v1813 = vcombine.high %v1700, %v1764
        %v1815 = vunpack.c.l.s4 1983009808
        %v1816 = vunpack.c.0.s8 %v1815
        %v1817 = vlaneseq
        %v1818 = vshrl.u32 %v1817, 7
        %v1819 = vsub.s32 %v1816, %v1818
        %v1820 = vrot.slane %v1812, %v1819
        %v1822 = vunpack.c.l.s4 1983009808
        %v1823 = vunpack.c.0.s8 %v1822
        %v1824 = vlaneseq
        %v1825 = vshrl.u32 %v1824, 7
        %v1826 = vsub.s32 %v1823, %v1825
        %v1827 = vrot.slane %v1813, %v1826
        %v1828 = vcombine.low %v1732, %v1796
        %v1829 = vcombine.high %v1732, %v1796
        %v1831 = vunpack.c.l.s4 1983009808
        %v1832 = vunpack.c.0.s8 %v1831
        %v1833 = vlaneseq
        %v1834 = vshrl.u32 %v1833, 7
        %v1835 = vsub.s32 %v1832, %v1834
        %v1836 = vrot.slane %v1828, %v1835
        %v1838 = vunpack.c.l.s4 1983009808
        %v1839 = vunpack.c.0.s8 %v1838
        %v1840 = vlaneseq
        %v1841 = vshrl.u32 %v1840, 7
        %v1842 = vsub.s32 %v1839, %v1841
        %v1843 = vrot.slane %v1829, %v1842
        %v1844 = vcombine.low %v1820, %v1836
        %v1845 = vcombine.high %v1820, %v1836
        %v1847 = vunpack.c.l.s4 1934713408
        %v1848 = vunpack.c.0.s8 %v1847
        %v1849 = vlaneseq
        %v1850 = vshrl.u32 %v1849, 7
        %v1851 = vsub.s32 %v1848, %v1850
        %v1852 = vrot.slane %v1844, %v1851
        %v1854 = vunpack.c.l.s4 1934713408
        %v1855 = vunpack.c.0.s8 %v1854
        %v1856 = vlaneseq
        %v1857 = vshrl.u32 %v1856, 7
        %v1858 = vsub.s32 %v1855, %v1857
        %v1859 = vrot.slane %v1845, %v1858
        %v1860 = vcombine.low %v1827, %v1843
        %v1861 = vcombine.high %v1827, %v1843
        %v1863 = vunpack.c.l.s4 1934713408
        %v1864 = vunpack.c.0.s8 %v1863
        %v1865 = vlaneseq
        %v1866 = vshrl.u32 %v1865, 7
        %v1867 = vsub.s32 %v1864, %v1866
        %v1868 = vrot.slane %v1860, %v1867
        %v1870 = vunpack.c.l.s4 1934713408
        %v1871 = vunpack.c.0.s8 %v1870
        %v1872 = vlaneseq
        %v1873 = vshrl.u32 %v1872, 7
        %v1874 = vsub.s32 %v1871, %v1873
        %v1875 = vrot.slane %v1861, %v1874
        %v1876 = vcombine.high %v1852, 0.0
        %v1877 = vcombine.high %v1859, 0.0
        %v1878 = vcombine.high %v1868, 0.0
        %v1879 = vcombine.high %v1875, 0.0
        %v1880 = vcombine.low %v1852, %v1859
        %v1882 = vunpack.c.l.s4 1983009808
        %v1883 = vunpack.c.0.s8 %v1882
        %v1884 = vlaneseq
        %v1885 = vshrl.u32 %v1884, 7
        %v1886 = vsub.s32 %v1883, %v1885
        %v1887 = vrot.slane %v1880, %v1886
        %v1888 = vcombine.low %v1876, %v1877
        %v1890 = vunpack.c.l.s4 1983009808
        %v1891 = vunpack.c.0.s8 %v1890
        %v1892 = vlaneseq
        %v1893 = vshrl.u32 %v1892, 7
        %v1894 = vsub.s32 %v1891, %v1893
        %v1895 = vrot.slane %v1888, %v1894
        %v1896 = vcombine.low %v1868, %v1875
        %v1898 = vunpack.c.l.s4 1983009808
        %v1899 = vunpack.c.0.s8 %v1898
        %v1900 = vlaneseq
        %v1901 = vshrl.u32 %v1900, 7
        %v1902 = vsub.s32 %v1899, %v1901
        %v1903 = vrot.slane %v1896, %v1902
        %v1904 = vcombine.low %v1878, %v1879
        %v1906 = vunpack.c.l.s4 1983009808
        %v1907 = vunpack.c.0.s8 %v1906
        %v1908 = vlaneseq
        %v1909 = vshrl.u32 %v1908, 7
        %v1910 = vsub.s32 %v1907, %v1909
        %v1911 = vrot.slane %v1904, %v1910
        %v1912 = vcombine.low %v1887, %v1895
        %v1913 = vcombine.high %v1887, %v1895
        %v1915 = vunpack.c.l.s4 1934713408
        %v1916 = vunpack.c.0.s8 %v1915
        %v1917 = vlaneseq
        %v1918 = vshrl.u32 %v1917, 7
        %v1919 = vsub.s32 %v1916, %v1918
        %v1920 = vrot.slane %v1912, %v1919
        %v1922 = vunpack.c.l.s4 1934713408
        %v1923 = vunpack.c.0.s8 %v1922
        %v1924 = vlaneseq
        %v1925 = vshrl.u32 %v1924, 7
        %v1926 = vsub.s32 %v1923, %v1925
        %v1927 = vrot.slane %v1913, %v1926
        %v1928 = vcombine.low %v1903, %v1911
        %v1929 = vcombine.high %v1903, %v1911
        %v1931 = vunpack.c.l.s4 1934713408
        %v1932 = vunpack.c.0.s8 %v1931
        %v1933 = vlaneseq
        %v1934 = vshrl.u32 %v1933, 7
        %v1935 = vsub.s32 %v1932, %v1934
        %v1936 = vrot.slane %v1928, %v1935
        %v1938 = vunpack.c.l.s4 1934713408
        %v1939 = vunpack.c.0.s8 %v1938
        %v1940 = vlaneseq
        %v1941 = vshrl.u32 %v1940, 7
        %v1942 = vsub.s32 %v1939, %v1941
        %v1943 = vrot.slane %v1929, %v1942
        %v1944 = vcombine.low %v1920, %v1936
        %v1945 = vcombine.high %v1920, %v1936
        %v1946 = vcombine.low %v1927, %v1943
        %v1947 = vcombine.high %v1927, %v1943
        %1949 = vrot.lane.b32.xlu0 %v1945, 8
        %v1950 = vpop.permute.xlu0 %1949
        %1953 = vrot.lane.b32.xlu0 %v1946, 16
        %v1954 = vpop.permute.xlu0 %1953
        %1957 = vrot.lane.b32.xlu0 %v1947, 24
        %v1958 = vpop.permute.xlu0 %1957
        %v1960 = vsel %vm910, %v1944, %v1950
        %vm1961 = vcmask 130048
        %v1962 = vsel %vm1961, %v1960, %v1954
        %vm1963 = vcmask 195584
        %v1964 = vsel %vm1963, %v1962, %v1958
        %1965 = vst.msk [vmem:[%s501] sm:$0xff] %vm515, %v1964
        %s1966 = sand.u32 %s260, 1
        %s1967 = scalar_lea.sflag [#allocation4], %s1966
        %s1968 = sand.u32 %s260, 1
        %s1969 = smul.addr %s1968, 8
        %s1970 = scalar_lea.vmem [#allocation17], %s1969
        // Predicated region
        $region93: #{tpu_custom_call.1} parent=55 // pred_check
          %p1971 = pneg %p270
        $region94: #{tpu_custom_call.1} parent=55 // pred_check_branch
          %1973 = sbr.rel (%p1971) target = $region96
        $region95: #{tpu_custom_call.1} parent=55 // pred_region
          %s1975 = ssub.s32 128, 128
          %1976 = vsyncadd %s1967, %s1975
          %s1977 = sadd.s32 %s37, %s36
          %s1978 = smul.addr %s1977, 128
          %s1979 = scalar_lea.hbm %s9, %s1978
          %s1981 = sshll.u32 %s1970, 4
          %s1982 = int_to_ptr.vmem [resolvable:$true] %s1981
          %1984 = dma.vmem_to_hbm [thread:$0]  %s1982, 128, %s1979, %s1967
        $region96: #{tpu_custom_call.1} parent=55 // pred_fallthru
          _
      $region56: #{tpu_custom_call.1} parent=5 // pred_fallthru
        _
      %p1985 = scmp.le.s32.totalorder 2, %s27
      // Predicated region
      $region97: #{tpu_custom_call.1} parent=5 // pred_check
        %p1986 = pneg %p1985
      $region98: #{tpu_custom_call.1} parent=5 // pred_check_branch
        %1988 = sbr.rel (%p1986) target = $region100
      $region99: #{tpu_custom_call.1} parent=5 // pred_region
        %s1989 = ssub.s32 %s27, 2
        // Predicated region
        $region101: #{tpu_custom_call.1} parent=99 // pred_check
          %p1990 = pneg %p276
        $region102: #{tpu_custom_call.1} parent=99 // pred_check_branch
          %1992 = sbr.rel (%p1990) target = $region104
        $region103: #{tpu_custom_call.1} parent=99 // pred_region
          %s1993 = sand.u32 %s261, 1
          %s1994 = scalar_lea.sflag [#allocation4], %s1993
          %s1995 = sand.u32 %s261, 1
          %s1996 = smul.addr %s1995, 8
          %s1997 = scalar_lea.vmem [#allocation17], %s1996
          %1998 = dma.done %s1994, 128
        $region104: #{tpu_custom_call.1} parent=99 // pred_fallthru
          _
      $region100: #{tpu_custom_call.1} parent=5 // pred_fallthru
        _
    $region6: #{tpu_custom_call.1} parent=1 // loop_footer
      %s31 = sadd.s32 1, %s27
    $region7: #{tpu_custom_call.1} parent=1 // loop_footer_branch
      %26 = sbr.rel target = $region3
    $region8: #{tpu_custom_call.1} parent=1 // loop_exit
      _
    %1999 = vsyncpa [#allocation3], 1
    %s2000 = scalar_lea.sflag [#allocation3], 1
    %2001 = vsyncpa %s2000, 1
    %2002 = vsyncpa [#allocation6], 1
    %s2003 = scalar_lea.sflag [#allocation6], 1
    %2004 = vsyncpa %s2003, 1
    %2005 = vsyncpa [#allocation9], 1
    %2006 = vsyncpa [#allocation12], 1
    %2007 = vsyncpa [#allocation15], 1
    %2008 = vsyncpa [#allocation4], 1
    %s2009 = scalar_lea.sflag [#allocation4], 1
    %2010 = vsyncpa %s2009, 1

</llo_original>
